<compile_context>
chip_gen: v6e
topology: v6e:2x2x1
jax: 0.10.0
libtpu: 0.0.40
codegen_flags: <defaults>
</compile_context>

<pallas_src>
import numpy as np

import jax
import jax.numpy as jnp
from jax.experimental import pallas as pl
from jax.experimental.pallas import tpu as pltpu


# ----------------------------------------------------------------------------
# Static operator construction (numpy, trace-time only)
# ----------------------------------------------------------------------------
def _expand_mats(H, W):
    """eh (H, HW) / ew (W, HW): 0/1 matrices. Used both for pooling (x @ eh^T / W etc.,
    expressed as a contraction over HW) and for re-broadcasting the per-row / per-column
    gates back to all HW pixels."""
    HW = H * W
    eh = np.zeros((H, HW), np.float32)
    ew = np.zeros((W, HW), np.float32)
    hs = np.repeat(np.arange(H), W)
    ws = np.tile(np.arange(W), H)
    ps = np.arange(HW)
    eh[hs, ps] = 1.0
    ew[ws, ps] = 1.0
    return eh, ew


def _spatial_conv_index(H, W, K):
    """Index matrix (2*HW, HW) into the flattened (2*K*K,) conv weights (sentinel
    2*K*K -> 0) so that a SAME KxK conv (2ch -> 1ch) becomes a single dense matmul:
    conv = planes (NB, 2*HW) @ weights_padded[idx]."""
    P = K // 2
    HW = H * W
    idx = np.full((2 * HW, HW), 2 * K * K, dtype=np.int32)
    hs = np.arange(H)[:, None]
    ws = np.arange(W)[None, :]
    out_p = np.broadcast_to(hs * W + ws, (H, W))
    for c in range(2):
        for i in range(K):
            for j in range(K):
                hh = hs + (i - P)
                ww = ws + (j - P)
                valid = (hh >= 0) & (hh < H) & (ww >= 0) & (ww < W)
                in_p = c * HW + hh * W + ww
                idx[in_p[valid], out_p[valid]] = c * K * K + i * K + j
    return idx


def _shuffle_perm_mats(C):
    """Channel_shuffle(groups=dim): output channel k <- input channel 2*(k%dim)+k//dim
    of [out1; out2], expressed as two one-hot (C, dim) matrices so the shuffle becomes
    two MXU matmuls and one dense store (no per-channel slices/concats)."""
    dim = C // 2
    P = np.zeros((C, C), np.float32)
    k = np.arange(C)
    P[k, 2 * (k % dim) + (k // dim)] = 1.0
    return np.ascontiguousarray(P[:, :dim]), np.ascontiguousarray(P[:, dim:])


# ----------------------------------------------------------------------------
# Fused kernel: CoordAtt + SpatialAttention + residuals + channel shuffle
# ----------------------------------------------------------------------------
def _mixsaca_kernel(x_ref, w1_ref, b1_ref, wh_ref, bh_ref, ww_ref, bw_ref,
                    eh_ref, ew_ref, conv_ref, p1_ref, p2_ref, sab_ref, o_ref):
    NB, _, dim, HW = x_ref.shape
    H = eh_ref.shape[0]
    W = ew_ref.shape[0]
    f32 = jnp.float32

    x = x_ref[...].astype(f32)                  # (NB, 2, dim, HW)
    x1 = x[:, 0]                                # CoordAtt half        (NB, dim, HW)
    x2 = x[:, 1]                                # SpatialAttention half (NB, dim, HW)

    # Hoisted batch-broadcasts of the small operands (done once, not in any loop).
    eh = jnp.broadcast_to(eh_ref[...], (NB, H, HW))
    ew = jnp.broadcast_to(ew_ref[...], (NB, W, HW))
    w1 = jnp.broadcast_to(w1_ref[...], (NB,) + w1_ref.shape)
    wh = jnp.broadcast_to(wh_ref[...], (NB,) + wh_ref.shape)
    ww = jnp.broadcast_to(ww_ref[...], (NB,) + ww_ref.shape)
    p1 = jnp.broadcast_to(p1_ref[...], (NB,) + p1_ref.shape)
    p2 = jnp.broadcast_to(p2_ref[...], (NB,) + p2_ref.shape)
    b1 = b1_ref[...]
    bh = bh_ref[...]
    bw = bw_ref[...]

    # ---------------- CoordAtt branch (fully batched) ------------------------
    # H / W average pools as batched matmuls against the 0/1 expand operators.
    x_h = jnp.einsum('ncp,nhp->nch', x1, eh,
                     preferred_element_type=f32) * (1.0 / W)       # (NB, dim, H)
    x_w = jnp.einsum('ncp,nwp->ncw', x1, ew,
                     preferred_element_type=f32) * (1.0 / H)       # (NB, dim, W)
    # conv1 (+ folded inference BatchNorm) + h_swish, applied to each pooled piece
    # separately (identical to applying them to the concatenated [x_h ; x_w]).
    y_h = jnp.einsum('nmd,ndh->nmh', w1, x_h, preferred_element_type=f32) + b1
    y_w = jnp.einsum('nmd,ndw->nmw', w1, x_w, preferred_element_type=f32) + b1
    y_h = y_h * (jnp.clip(y_h + 3.0, 0.0, 6.0) * (1.0 / 6.0))
    y_w = y_w * (jnp.clip(y_w + 3.0, 0.0, 6.0) * (1.0 / 6.0))
    a_h = jax.nn.sigmoid(
        jnp.einsum('ndm,nmh->ndh', wh, y_h, preferred_element_type=f32) + bh)
    a_w = jax.nn.sigmoid(
        jnp.einsum('ndm,nmw->ndw', ww, y_w, preferred_element_type=f32) + bw)
    # Re-broadcast the gates to all HW pixels with the same 0/1 operators.
    gate = (jnp.einsum('ndh,nhp->ndp', a_h, eh, preferred_element_type=f32) *
            jnp.einsum('ndw,nwp->ndp', a_w, ew, preferred_element_type=f32))
    out1 = x1 * (gate + 1.0)                     # CoordAtt(sp1) + sp1

    # ---------------- SpatialAttention branch (batched) ----------------------
    mx = jnp.max(x2, axis=1)                     # (NB, HW)
    av = jnp.mean(x2, axis=1)                    # (NB, HW)
    planes = jnp.concatenate([mx, av], axis=-1)  # (NB, 2*HW)
    att = jax.nn.sigmoid(                        # 7x7 SAME conv as one 2D matmul
        jnp.dot(planes, conv_ref[...], preferred_element_type=f32) + sab_ref[0, 0])
    out2 = x2 * (att[:, None, :] + 1.0)          # sp2 * SA(sp2) + sp2

    # -------- channel shuffle: two one-hot matmuls + one dense store ---------
    shuffled = (jnp.einsum('nkd,ndp->nkp', p1, out1, preferred_element_type=f32) +
                jnp.einsum('nkd,ndp->nkp', p2, out2, preferred_element_type=f32))
    o_ref[...] = shuffled.astype(o_ref.dtype)    # (NB, C, HW), lane-dense, unmasked


# ----------------------------------------------------------------------------
# Wrapper: generation-aware VMEM limit + bandwidth/pipeline-aware NB selection
# ----------------------------------------------------------------------------
def _vmem_limit_bytes():
    """~half of physical VMEM: 64 MiB on v5e/v6e (128 MiB), 32 MiB on v7x (64 MiB)."""
    try:
        cap = int(pltpu.get_tpu_info().vmem_capacity_bytes)
    except Exception:
        cap = 64 * 1024 * 1024                      # conservative (v7x-like) fallback
    return max(32 * 1024 * 1024, min(64 * 1024 * 1024, cap // 2))


def _vmem_step_bytes(NB, C, H, W, mip):
    """Estimated VMEM working set for one grid step, including kernel temporaries
    and broadcast operands (not just the pipelined blocks)."""
    dim = C // 2
    HW = H * W
    B = 4                                           # f32 bytes
    act = NB * C * HW * B                           # one block of activations
    const = B * (mip * dim + mip + 2 * (dim * mip + dim)
                 + (H + W) * HW + 2 * HW * HW + 2 * C * dim)
    bcast = B * NB * ((H + W) * HW + 2 * C * dim + 3 * mip * dim)
    temps = 4 * act                                 # x, gate, out1/out2, shuffled (+slack)
    # in + out blocks double-buffered; constants conservatively double-buffered too.
    return 4 * act + 2 * const + bcast + temps


def _pick_batch_block(N, C, H, W, mip, budget):
    """Largest useful divisor NB of N: fit the VMEM budget, prefer >= 4 grid steps
    (megacore x pipelining), and target >= ~1 MiB of activations per step."""
    per_img = C * H * W * 4
    divs = [d for d in range(1, N + 1) if N % d == 0]
    fits = [d for d in divs if _vmem_step_bytes(d, C, H, W, mip) <= budget] or [1]
    cand = fits
    for min_grid in (4, 2):
        sub = [d for d in fits if N // d >= min_grid]
        if sub:
            cand = sub
            break
    big = [d for d in cand if d * per_img >= (1 << 20)]
    return min(big) if big else max(cand)


def _rep_spec(shape):
    nd = len(shape)
    return pl.BlockSpec(shape, lambda n, _nd=nd: (0,) * _nd)


def mix_saca(x, params):
    N, C, H, W = x.shape
    dim = C // 2
    HW = H * W
    mip = params["w1"].shape[0]

    # ---- fold / pre-pack the tiny parameters on the wrapper side ----
    # TODO(synk): training-mode BatchNorm (batch statistics) is not implemented;
    # inference-mode BN is folded into conv1's weight / bias.
    w1f = params["w1"] * params["bn_scale"]                       # (mip, dim)
    b1f = params["b1"] * params["bn_scale"] + params["bn_shift"]  # (mip, 1)

    eh_np, ew_np = _expand_mats(H, W)
    eh = jnp.asarray(eh_np)                                       # (H, HW)
    ew = jnp.asarray(ew_np)                                       # (W, HW)

    K = int(round(np.sqrt(params["sa_w"].shape[1])))
    idx = _spatial_conv_index(H, W, K)
    conv_op = jnp.concatenate(
        [params["sa_w"].reshape(-1),
         jnp.zeros((1,), params["sa_w"].dtype)])[idx]             # (2*HW, HW)

    p1_np, p2_np = _shuffle_perm_mats(C)
    p1 = jnp.asarray(p1_np)                                       # (C, dim)
    p2 = jnp.asarray(p2_np)                                       # (C, dim)

    # Free reshapes: tile-aligned halves on input, lane-dense HW on output.
    xf = x.reshape(N, 2, dim, HW)

    limit = _vmem_limit_bytes()
    NB = _pick_batch_block(N, C, H, W, mip, int(limit * 0.75))

    out = pl.pallas_call(
        _mixsaca_kernel,
        out_shape=jax.ShapeDtypeStruct((N, C, HW), x.dtype),
        grid=(N // NB,),
        in_specs=[
            pl.BlockSpec((NB, 2, dim, HW), lambda n: (n, 0, 0, 0)),
            _rep_spec((mip, dim)),
            _rep_spec((mip, 1)),
            _rep_spec((dim, mip)),
            _rep_spec((dim, 1)),
            _rep_spec((dim, mip)),
            _rep_spec((dim, 1)),
            _rep_spec((H, HW)),
            _rep_spec((W, HW)),
            _rep_spec((2 * HW, HW)),
            _rep_spec((C, dim)),
            _rep_spec((C, dim)),
            pl.BlockSpec(memory_space=pltpu.MemorySpace.SMEM),
        ],
        out_specs=pl.BlockSpec((NB, C, HW), lambda n: (n, 0, 0)),
        compiler_params=pltpu.CompilerParams(
            dimension_semantics=("parallel",),
            vmem_limit_bytes=limit),
    )(xf, w1f, b1f, params["wh"], params["bh"], params["ww"], params["bw"],
      eh, ew, conv_op, p1, p2, params["sa_b"])

    return out.reshape(N, C, H, W)


# ----------------------------------------------------------------------------
# Deterministic parameter init (shapes from the module __init__)
# ----------------------------------------------------------------------------
def init_params(key, dim, reduction=32, kernel_size=7):
    mip = max(8, dim // reduction)
    ks = jax.random.split(key, 12)

    def u(k, shape, scale):
        return jax.random.uniform(k, shape, jnp.float32, -scale, scale)

    w1 = u(ks[0], (mip, dim), 0.5)
    b1 = u(ks[1], (mip, 1), 0.1)
    gamma = 1.0 + u(ks[2], (mip, 1), 0.1)
    beta = u(ks[3], (mip, 1), 0.1)
    r_mean = u(ks[4], (mip, 1), 0.1)
    r_var = 1.0 + jnp.abs(u(ks[5], (mip, 1), 0.1))
    eps = 1e-5
    bn_scale = gamma / jnp.sqrt(r_var + eps)
    bn_shift = beta - r_mean * bn_scale
    wh = u(ks[6], (dim, mip), 0.5)
    bh = u(ks[7], (dim, 1), 0.1)
    ww = u(ks[8], (dim, mip), 0.5)
    bw = u(ks[9], (dim, 1), 0.1)
    sa_w = u(ks[10], (2, kernel_size * kernel_size), 0.2)
    sa_b = u(ks[11], (1, 1), 0.1)

    return dict(w1=w1, b1=b1, bn_scale=bn_scale, bn_shift=bn_shift,
                wh=wh, bh=bh, ww=ww, bw=bw, sa_w=sa_w, sa_b=sa_b)


# ----------------------------------------------------------------------------
# Pure-JAX reference for verification
# ----------------------------------------------------------------------------
def reference(x, params):
    N, C, H, W = x.shape
    dim = C // 2
    sp1, sp2 = x[:, :dim], x[:, dim:]

    # CoordAtt
    x_h = jnp.mean(sp1, axis=3)
    x_w = jnp.mean(sp1, axis=2)
    y = jnp.concatenate([x_h, x_w], axis=2)
    y = jnp.einsum('md,ndp->nmp', params['w1'], y,
                   precision=jax.lax.Precision.HIGHEST) + params['b1'][None]
    y = y * params['bn_scale'][None] + params['bn_shift'][None]
    y = y * jnp.clip(y + 3.0, 0.0, 6.0) / 6.0
    yh, yw = y[..., :H], y[..., H:]
    a_h = jax.nn.sigmoid(jnp.einsum('dm,nmh->ndh', params['wh'], yh,
                                    precision=jax.lax.Precision.HIGHEST)
                         + params['bh'][None])
    a_w = jax.nn.sigmoid(jnp.einsum('dm,nmw->ndw', params['ww'], yw,
                                    precision=jax.lax.Precision.HIGHEST)
                         + params['bw'][None])
    out1 = sp1 * a_w[:, :, None, :] * a_h[:, :, :, None] + sp1

    # SpatialAttention
    mx = jnp.max(sp2, axis=1, keepdims=True)
    av = jnp.mean(sp2, axis=1, keepdims=True)
    inp = jnp.concatenate([mx, av], axis=1)
    w = params['sa_w'].reshape(1, 2, 7, 7)
    conv = jax.lax.conv_general_dilated(
        inp, w, (1, 1), [(3, 3), (3, 3)],
        dimension_numbers=('NCHW', 'OIHW', 'NCHW'),
        precision=jax.lax.Precision.HIGHEST) + params['sa_b'][0, 0]
    out2 = sp2 * jax.nn.sigmoid(conv) + sp2

    y_all = jnp.concatenate([out1, out2], axis=1)
    return y_all.reshape(N, dim, 2, H, W).transpose(0, 2, 1, 3, 4).reshape(N, C, H, W)


if __name__ == "__main__":
    key = jax.random.PRNGKey(0)
    kx, kp = jax.random.split(key)

    N, C, H, W = 2, 8, 16, 16          # dim = C // 2 = 4, mip = max(8, 4 // 32) = 8
    x = jax.random.normal(kx, (N, C, H, W), jnp.float32)
    params = init_params(kp, C // 2)

    out = jax.jit(mix_saca)(x, params)
    out = jax.block_until_ready(out)

    ref = reference(x, params)
    assert out.shape == (N, C, H, W)
    err = float(jnp.max(jnp.abs(out - ref)))
    # tolerance allows for the MXU's f32 pass decomposition in the long-contraction
    # (pooling / 7x7-conv) matmuls vs. the HIGHEST-precision XLA reference
    assert jnp.allclose(out, ref, atol=1e-2, rtol=1e-2), f"max abs err {err}"

    print("KERNEL_OK")
</pallas_src>

<mosaic_0001>
module attributes {stable_mosaic.version = 11 : i64} {
  func.func @_mixsaca_kernel(%arg0: i32, %arg1: memref<1x2x4x256xf32, #tpu.memory_space<vmem>>, %arg2: memref<8x4xf32, #tpu.memory_space<vmem>>, %arg3: memref<8x1xf32, #tpu.memory_space<vmem>>, %arg4: memref<4x8xf32, #tpu.memory_space<vmem>>, %arg5: memref<4x1xf32, #tpu.memory_space<vmem>>, %arg6: memref<4x8xf32, #tpu.memory_space<vmem>>, %arg7: memref<4x1xf32, #tpu.memory_space<vmem>>, %arg8: memref<16x256xf32, #tpu.memory_space<vmem>>, %arg9: memref<16x256xf32, #tpu.memory_space<vmem>>, %arg10: memref<512x256xf32, #tpu.memory_space<vmem>>, %arg11: memref<8x4xf32, #tpu.memory_space<vmem>>, %arg12: memref<8x4xf32, #tpu.memory_space<vmem>>, %arg13: memref<1x1xf32, #tpu.memory_space<smem>>, %arg14: memref<1x8x256xf32, #tpu.memory_space<vmem>>) attributes {dimension_semantics = [#tpu.dimension_semantics<parallel>], iteration_bounds = array<i64: 2>, scalar_prefetch = 0 : i64, scratch_operands = 0 : i64, tpu.core_type = #tpu.core_type<tc>, window_params = [{transform_indices = @transform_0, window_bounds = array<i64: 1, 2, 4, 256>}, {pipeline_mode = #tpu.pipeline_mode<synchronous>, transform_indices = @transform_1, window_bounds = array<i64: 8, 4>}, {pipeline_mode = #tpu.pipeline_mode<synchronous>, transform_indices = @transform_2, window_bounds = array<i64: 8, 1>}, {pipeline_mode = #tpu.pipeline_mode<synchronous>, transform_indices = @transform_3, window_bounds = array<i64: 4, 8>}, {pipeline_mode = #tpu.pipeline_mode<synchronous>, transform_indices = @transform_4, window_bounds = array<i64: 4, 1>}, {pipeline_mode = #tpu.pipeline_mode<synchronous>, transform_indices = @transform_5, window_bounds = array<i64: 4, 8>}, {pipeline_mode = #tpu.pipeline_mode<synchronous>, transform_indices = @transform_6, window_bounds = array<i64: 4, 1>}, {pipeline_mode = #tpu.pipeline_mode<synchronous>, transform_indices = @transform_7, window_bounds = array<i64: 16, 256>}, {pipeline_mode = #tpu.pipeline_mode<synchronous>, transform_indices = @transform_8, window_bounds = array<i64: 16, 256>}, {pipeline_mode = #tpu.pipeline_mode<synchronous>, transform_indices = @transform_9, window_bounds = array<i64: 512, 256>}, {pipeline_mode = #tpu.pipeline_mode<synchronous>, transform_indices = @transform_10, window_bounds = array<i64: 8, 4>}, {pipeline_mode = #tpu.pipeline_mode<synchronous>, transform_indices = @transform_11, window_bounds = array<i64: 8, 4>}, {transform_indices = @transform_12, window_bounds = array<i64: 1, 1>}, {transform_indices = @transform_13, window_bounds = array<i64: 1, 8, 256>}]} {
    %c0 = arith.constant 0 : index
    %c0_0 = arith.constant 0 : index
    %c0_1 = arith.constant 0 : index
    %c0_2 = arith.constant 0 : index
    %0 = vector.load %arg1[%c0, %c0_0, %c0_1, %c0_2] : memref<1x2x4x256xf32, #tpu.memory_space<vmem>>, vector<1x2x4x256xf32>
    %1 = vector.extract_strided_slice %0 {offsets = [0, 0, 0, 0], sizes = [1, 1, 4, 256], strides = [1, 1, 1, 1]} : vector<1x2x4x256xf32> to vector<1x1x4x256xf32>
    %2 = vector.shape_cast %1 : vector<1x1x4x256xf32> to vector<1x4x256xf32>
    %3 = vector.extract_strided_slice %0 {offsets = [0, 1, 0, 0], sizes = [1, 1, 4, 256], strides = [1, 1, 1, 1]} : vector<1x2x4x256xf32> to vector<1x1x4x256xf32>
    %4 = vector.shape_cast %3 : vector<1x1x4x256xf32> to vector<1x4x256xf32>
    %c0_3 = arith.constant 0 : index
    %c0_4 = arith.constant 0 : index
    %5 = vector.load %arg8[%c0_3, %c0_4] : memref<16x256xf32, #tpu.memory_space<vmem>>, vector<16x256xf32>
    %6 = vector.shape_cast %5 : vector<16x256xf32> to vector<1x16x256xf32>
    %c0_5 = arith.constant 0 : index
    %c0_6 = arith.constant 0 : index
    %7 = vector.load %arg9[%c0_5, %c0_6] : memref<16x256xf32, #tpu.memory_space<vmem>>, vector<16x256xf32>
    %8 = vector.shape_cast %7 : vector<16x256xf32> to vector<1x16x256xf32>
    %c0_7 = arith.constant 0 : index
    %c0_8 = arith.constant 0 : index
    %9 = vector.load %arg2[%c0_7, %c0_8] : memref<8x4xf32, #tpu.memory_space<vmem>>, vector<8x4xf32>
    %10 = vector.shape_cast %9 : vector<8x4xf32> to vector<1x8x4xf32>
    %c0_9 = arith.constant 0 : index
    %c0_10 = arith.constant 0 : index
    %11 = vector.load %arg4[%c0_9, %c0_10] : memref<4x8xf32, #tpu.memory_space<vmem>>, vector<4x8xf32>
    %12 = vector.shape_cast %11 : vector<4x8xf32> to vector<1x4x8xf32>
    %c0_11 = arith.constant 0 : index
    %c0_12 = arith.constant 0 : index
    %13 = vector.load %arg6[%c0_11, %c0_12] : memref<4x8xf32, #tpu.memory_space<vmem>>, vector<4x8xf32>
    %14 = vector.shape_cast %13 : vector<4x8xf32> to vector<1x4x8xf32>
    %c0_13 = arith.constant 0 : index
    %c0_14 = arith.constant 0 : index
    %15 = vector.load %arg11[%c0_13, %c0_14] : memref<8x4xf32, #tpu.memory_space<vmem>>, vector<8x4xf32>
    %16 = vector.shape_cast %15 : vector<8x4xf32> to vector<1x8x4xf32>
    %c0_15 = arith.constant 0 : index
    %c0_16 = arith.constant 0 : index
    %17 = vector.load %arg12[%c0_15, %c0_16] : memref<8x4xf32, #tpu.memory_space<vmem>>, vector<8x4xf32>
    %18 = vector.shape_cast %17 : vector<8x4xf32> to vector<1x8x4xf32>
    %c0_17 = arith.constant 0 : index
    %c0_18 = arith.constant 0 : index
    %19 = vector.load %arg3[%c0_17, %c0_18] : memref<8x1xf32, #tpu.memory_space<vmem>>, vector<8x1xf32>
    %c0_19 = arith.constant 0 : index
    %c0_20 = arith.constant 0 : index
    %20 = vector.load %arg5[%c0_19, %c0_20] : memref<4x1xf32, #tpu.memory_space<vmem>>, vector<4x1xf32>
    %c0_21 = arith.constant 0 : index
    %c0_22 = arith.constant 0 : index
    %21 = vector.load %arg7[%c0_21, %c0_22] : memref<4x1xf32, #tpu.memory_space<vmem>>, vector<4x1xf32>
    "tpu.trace_start"() <{level = 10 : i32, message = "ncp,nhp->nch"}> : () -> ()
    %cst = arith.constant dense<0.000000e+00> : vector<1x4x16xf32>
    %22 = tpu.matmul %2, %6, %cst {dimension_numbers = #tpu.dot_dimension_numbers<[2], [2], [1], [1], [0, 0, 0, 1, 1, 1], [0], [0]>} : vector<1x4x256xf32>, vector<1x16x256xf32>, vector<1x4x16xf32> -> vector<1x4x16xf32>
    "tpu.trace_stop"() : () -> ()
    %cst_23 = arith.constant 6.250000e-02 : f32
    %23 = vector.broadcast %cst_23 : f32 to vector<1x4x16xf32>
    %24 = arith.mulf %22, %23 : vector<1x4x16xf32>
    "tpu.trace_start"() <{level = 10 : i32, message = "ncp,nwp->ncw"}> : () -> ()
    %cst_24 = arith.constant dense<0.000000e+00> : vector<1x4x16xf32>
    %25 = tpu.matmul %2, %8, %cst_24 {dimension_numbers = #tpu.dot_dimension_numbers<[2], [2], [1], [1], [0, 0, 0, 1, 1, 1], [0], [0]>} : vector<1x4x256xf32>, vector<1x16x256xf32>, vector<1x4x16xf32> -> vector<1x4x16xf32>
    "tpu.trace_stop"() : () -> ()
    %cst_25 = arith.constant 6.250000e-02 : f32
    %26 = vector.broadcast %cst_25 : f32 to vector<1x4x16xf32>
    %27 = arith.mulf %25, %26 : vector<1x4x16xf32>
    "tpu.trace_start"() <{level = 10 : i32, message = "nmd,ndh->nmh"}> : () -> ()
    %cst_26 = arith.constant dense<0.000000e+00> : vector<1x8x16xf32>
    %28 = tpu.matmul %10, %24, %cst_26 {dimension_numbers = #tpu.dot_dimension_numbers<[2], [1], [1], [2], [0, 0, 0, 1, 1, 2], [0], [0]>} : vector<1x8x4xf32>, vector<1x4x16xf32>, vector<1x8x16xf32> -> vector<1x8x16xf32>
    "tpu.trace_stop"() : () -> ()
    %29 = vector.shape_cast %19 : vector<8x1xf32> to vector<1x8x1xf32>
    %30 = vector.broadcast %29 : vector<1x8x1xf32> to vector<1x8x16xf32>
    %31 = arith.addf %28, %30 : vector<1x8x16xf32>
    "tpu.trace_start"() <{level = 10 : i32, message = "nmd,ndw->nmw"}> : () -> ()
    %cst_27 = arith.constant dense<0.000000e+00> : vector<1x8x16xf32>
    %32 = tpu.matmul %10, %27, %cst_27 {dimension_numbers = #tpu.dot_dimension_numbers<[2], [1], [1], [2], [0, 0, 0, 1, 1, 2], [0], [0]>} : vector<1x8x4xf32>, vector<1x4x16xf32>, vector<1x8x16xf32> -> vector<1x8x16xf32>
    "tpu.trace_stop"() : () -> ()
    %33 = vector.shape_cast %19 : vector<8x1xf32> to vector<1x8x1xf32>
    %34 = vector.broadcast %33 : vector<1x8x1xf32> to vector<1x8x16xf32>
    %35 = arith.addf %32, %34 : vector<1x8x16xf32>
    %cst_28 = arith.constant 3.000000e+00 : f32
    %36 = vector.broadcast %cst_28 : f32 to vector<1x8x16xf32>
    %37 = arith.addf %31, %36 : vector<1x8x16xf32>
    %cst_29 = arith.constant 0.000000e+00 : f32
    %cst_30 = arith.constant 6.000000e+00 : f32
    %38 = vector.broadcast %cst_29 : f32 to vector<1x8x16xf32>
    %39 = arith.maximumf %38, %37 : vector<1x8x16xf32>
    %40 = vector.broadcast %cst_30 : f32 to vector<1x8x16xf32>
    %41 = arith.minimumf %40, %39 : vector<1x8x16xf32>
    %cst_31 = arith.constant 0.166666672 : f32
    %42 = vector.broadcast %cst_31 : f32 to vector<1x8x16xf32>
    %43 = arith.mulf %41, %42 : vector<1x8x16xf32>
    %44 = arith.mulf %31, %43 : vector<1x8x16xf32>
    %cst_32 = arith.constant 3.000000e+00 : f32
    %45 = vector.broadcast %cst_32 : f32 to vector<1x8x16xf32>
    %46 = arith.addf %35, %45 : vector<1x8x16xf32>
    %cst_33 = arith.constant 0.000000e+00 : f32
    %cst_34 = arith.constant 6.000000e+00 : f32
    %47 = vector.broadcast %cst_33 : f32 to vector<1x8x16xf32>
    %48 = arith.maximumf %47, %46 : vector<1x8x16xf32>
    %49 = vector.broadcast %cst_34 : f32 to vector<1x8x16xf32>
    %50 = arith.minimumf %49, %48 : vector<1x8x16xf32>
    %cst_35 = arith.constant 0.166666672 : f32
    %51 = vector.broadcast %cst_35 : f32 to vector<1x8x16xf32>
    %52 = arith.mulf %50, %51 : vector<1x8x16xf32>
    %53 = arith.mulf %35, %52 : vector<1x8x16xf32>
    "tpu.trace_start"() <{level = 10 : i32, message = "ndm,nmh->ndh"}> : () -> ()
    %cst_36 = arith.constant dense<0.000000e+00> : vector<1x4x16xf32>
    %54 = tpu.matmul %12, %44, %cst_36 {dimension_numbers = #tpu.dot_dimension_numbers<[2], [1], [1], [2], [0, 0, 0, 1, 1, 2], [0], [0]>} : vector<1x4x8xf32>, vector<1x8x16xf32>, vector<1x4x16xf32> -> vector<1x4x16xf32>
    "tpu.trace_stop"() : () -> ()
    %55 = vector.shape_cast %20 : vector<4x1xf32> to vector<1x4x1xf32>
    %56 = vector.broadcast %55 : vector<1x4x1xf32> to vector<1x4x16xf32>
    %57 = arith.addf %54, %56 : vector<1x4x16xf32>
    %58 = arith.negf %57 : vector<1x4x16xf32>
    %59 = math.exp %58 : vector<1x4x16xf32>
    %cst_37 = arith.constant 1.000000e+00 : f32
    %60 = vector.broadcast %cst_37 : f32 to vector<1x4x16xf32>
    %61 = arith.addf %60, %59 : vector<1x4x16xf32>
    %62 = arith.divf %60, %61 : vector<1x4x16xf32>
    "tpu.trace_start"() <{level = 10 : i32, message = "ndm,nmw->ndw"}> : () -> ()
    %cst_38 = arith.constant dense<0.000000e+00> : vector<1x4x16xf32>
    %63 = tpu.matmul %14, %53, %cst_38 {dimension_numbers = #tpu.dot_dimension_numbers<[2], [1], [1], [2], [0, 0, 0, 1, 1, 2], [0], [0]>} : vector<1x4x8xf32>, vector<1x8x16xf32>, vector<1x4x16xf32> -> vector<1x4x16xf32>
    "tpu.trace_stop"() : () -> ()
    %64 = vector.shape_cast %21 : vector<4x1xf32> to vector<1x4x1xf32>
    %65 = vector.broadcast %64 : vector<1x4x1xf32> to vector<1x4x16xf32>
    %66 = arith.addf %63, %65 : vector<1x4x16xf32>
    %67 = arith.negf %66 : vector<1x4x16xf32>
    %68 = math.exp %67 : vector<1x4x16xf32>
    %cst_39 = arith.constant 1.000000e+00 : f32
    %69 = vector.broadcast %cst_39 : f32 to vector<1x4x16xf32>
    %70 = arith.addf %69, %68 : vector<1x4x16xf32>
    %71 = arith.divf %69, %70 : vector<1x4x16xf32>
    "tpu.trace_start"() <{level = 10 : i32, message = "ndh,nhp->ndp"}> : () -> ()
    %cst_40 = arith.constant dense<0.000000e+00> : vector<1x4x256xf32>
    %72 = tpu.matmul %62, %6, %cst_40 {dimension_numbers = #tpu.dot_dimension_numbers<[2], [1], [1], [2], [0, 0, 0, 1, 1, 2], [0], [0]>} : vector<1x4x16xf32>, vector<1x16x256xf32>, vector<1x4x256xf32> -> vector<1x4x256xf32>
    "tpu.trace_stop"() : () -> ()
    "tpu.trace_start"() <{level = 10 : i32, message = "ndw,nwp->ndp"}> : () -> ()
    %cst_41 = arith.constant dense<0.000000e+00> : vector<1x4x256xf32>
    %73 = tpu.matmul %71, %8, %cst_41 {dimension_numbers = #tpu.dot_dimension_numbers<[2], [1], [1], [2], [0, 0, 0, 1, 1, 2], [0], [0]>} : vector<1x4x16xf32>, vector<1x16x256xf32>, vector<1x4x256xf32> -> vector<1x4x256xf32>
    "tpu.trace_stop"() : () -> ()
    %74 = arith.mulf %72, %73 : vector<1x4x256xf32>
    %cst_42 = arith.constant 1.000000e+00 : f32
    %75 = vector.broadcast %cst_42 : f32 to vector<1x4x256xf32>
    %76 = arith.addf %74, %75 : vector<1x4x256xf32>
    %77 = arith.mulf %2, %76 : vector<1x4x256xf32>
    %cst_43 = arith.constant dense<0xFF800000> : vector<1x256xf32>
    %78 = vector.multi_reduction <maximumf>, %4, %cst_43 [1] : vector<1x4x256xf32> to vector<1x256xf32>
    %cst_44 = arith.constant dense<0.000000e+00> : vector<1x256xf32>
    %79 = vector.multi_reduction <add>, %4, %cst_44 [1] : vector<1x4x256xf32> to vector<1x256xf32>
    %cst_45 = arith.constant 4.000000e+00 : f32
    %80 = vector.broadcast %cst_45 : f32 to vector<1x256xf32>
    %81 = arith.divf %79, %80 : vector<1x256xf32>
    %82 = tpu.concatenate %78, %81 in 1 : vector<1x256xf32>, vector<1x256xf32> -> vector<1x512xf32>
    %c0_46 = arith.constant 0 : index
    %c0_47 = arith.constant 0 : index
    %83 = vector.load %arg10[%c0_46, %c0_47] : memref<512x256xf32, #tpu.memory_space<vmem>>, vector<512x256xf32>
    %cst_48 = arith.constant dense<0.000000e+00> : vector<1x256xf32>
    %84 = tpu.matmul %82, %83, %cst_48 {dimension_numbers = #tpu.dot_dimension_numbers<[1], [0], [0], [1], [0, 0, 1, 1], [], []>} : vector<1x512xf32>, vector<512x256xf32>, vector<1x256xf32> -> vector<1x256xf32>
    %c0_49 = arith.constant 0 : index
    %c0_50 = arith.constant 0 : index
    %85 = memref.load %arg13[%c0_49, %c0_50] : memref<1x1xf32, #tpu.memory_space<smem>>
    %86 = vector.broadcast %85 : f32 to vector<1x256xf32>
    %87 = arith.addf %84, %86 : vector<1x256xf32>
    %88 = arith.negf %87 : vector<1x256xf32>
    %89 = math.exp %88 : vector<1x256xf32>
    %cst_51 = arith.constant 1.000000e+00 : f32
    %90 = vector.broadcast %cst_51 : f32 to vector<1x256xf32>
    %91 = arith.addf %90, %89 : vector<1x256xf32>
    %92 = arith.divf %90, %91 : vector<1x256xf32>
    %93 = vector.shape_cast %92 : vector<1x256xf32> to vector<1x1x256xf32>
    %cst_52 = arith.constant 1.000000e+00 : f32
    %94 = vector.broadcast %cst_52 : f32 to vector<1x1x256xf32>
    %95 = arith.addf %93, %94 : vector<1x1x256xf32>
    %96 = vector.broadcast %95 : vector<1x1x256xf32> to vector<1x4x256xf32>
    %97 = arith.mulf %4, %96 : vector<1x4x256xf32>
    "tpu.trace_start"() <{level = 10 : i32, message = "nkd,ndp->nkp"}> : () -> ()
    %cst_53 = arith.constant dense<0.000000e+00> : vector<1x8x256xf32>
    %98 = tpu.matmul %16, %77, %cst_53 {dimension_numbers = #tpu.dot_dimension_numbers<[2], [1], [1], [2], [0, 0, 0, 1, 1, 2], [0], [0]>} : vector<1x8x4xf32>, vector<1x4x256xf32>, vector<1x8x256xf32> -> vector<1x8x256xf32>
    %cst_54 = arith.constant dense<0.000000e+00> : vector<1x8x256xf32>
    %99 = tpu.matmul %18, %97, %cst_54 {dimension_numbers = #tpu.dot_dimension_numbers<[2], [1], [1], [2], [0, 0, 0, 1, 1, 2], [0], [0]>} : vector<1x8x4xf32>, vector<1x4x256xf32>, vector<1x8x256xf32> -> vector<1x8x256xf32>
    "tpu.trace_stop"() : () -> ()
    %100 = arith.addf %98, %99 : vector<1x8x256xf32>
    %c0_55 = arith.constant 0 : index
    %c0_56 = arith.constant 0 : index
    %c0_57 = arith.constant 0 : index
    %101 = vector.load %arg14[%c0_55, %c0_56, %c0_57] : memref<1x8x256xf32, #tpu.memory_space<vmem>>, vector<1x8x256xf32>
    tpu.vector_store %arg14[%c0_55, %c0_56, %c0_57], %100 {strides = array<i32>} : memref<1x8x256xf32, #tpu.memory_space<vmem>>, vector<1x8x256xf32>,
    return
  }
  func.func @transform_0(%arg0: i32) -> (i32, i32, i32, i32) {
    %c0_i32 = arith.constant 0 : i32
    %c0_i32_0 = arith.constant 0 : i32
    %c0_i32_1 = arith.constant 0 : i32
    %c0_i32_2 = arith.constant 0 : i32
    return %arg0, %c0_i32, %c0_i32_0, %c0_i32_1 : i32, i32, i32, i32
  }
  func.func @transform_1(%arg0: i32) -> (i32, i32) {
    %c0_i32 = arith.constant 0 : i32
    %c0_i32_0 = arith.constant 0 : i32
    %c0_i32_1 = arith.constant 0 : i32
    return %c0_i32, %c0_i32_0 : i32, i32
  }
  func.func @transform_2(%arg0: i32) -> (i32, i32) {
    %c0_i32 = arith.constant 0 : i32
    %c0_i32_0 = arith.constant 0 : i32
    %c0_i32_1 = arith.constant 0 : i32
    return %c0_i32, %c0_i32_0 : i32, i32
  }
  func.func @transform_3(%arg0: i32) -> (i32, i32) {
    %c0_i32 = arith.constant 0 : i32
    %c0_i32_0 = arith.constant 0 : i32
    %c0_i32_1 = arith.constant 0 : i32
    return %c0_i32, %c0_i32_0 : i32, i32
  }
  func.func @transform_4(%arg0: i32) -> (i32, i32) {
    %c0_i32 = arith.constant 0 : i32
    %c0_i32_0 = arith.constant 0 : i32
    %c0_i32_1 = arith.constant 0 : i32
    return %c0_i32, %c0_i32_0 : i32, i32
  }
  func.func @transform_5(%arg0: i32) -> (i32, i32) {
    %c0_i32 = arith.constant 0 : i32
    %c0_i32_0 = arith.constant 0 : i32
    %c0_i32_1 = arith.constant 0 : i32
    return %c0_i32, %c0_i32_0 : i32, i32
  }
  func.func @transform_6(%arg0: i32) -> (i32, i32) {
    %c0_i32 = arith.constant 0 : i32
    %c0_i32_0 = arith.constant 0 : i32
    %c0_i32_1 = arith.constant 0 : i32
    return %c0_i32, %c0_i32_0 : i32, i32
  }
  func.func @transform_7(%arg0: i32) -> (i32, i32) {
    %c0_i32 = arith.constant 0 : i32
    %c0_i32_0 = arith.constant 0 : i32
    %c0_i32_1 = arith.constant 0 : i32
    return %c0_i32, %c0_i32_0 : i32, i32
  }
  func.func @transform_8(%arg0: i32) -> (i32, i32) {
    %c0_i32 = arith.constant 0 : i32
    %c0_i32_0 = arith.constant 0 : i32
    %c0_i32_1 = arith.constant 0 : i32
    return %c0_i32, %c0_i32_0 : i32, i32
  }
  func.func @transform_9(%arg0: i32) -> (i32, i32) {
    %c0_i32 = arith.constant 0 : i32
    %c0_i32_0 = arith.constant 0 : i32
    %c0_i32_1 = arith.constant 0 : i32
    return %c0_i32, %c0_i32_0 : i32, i32
  }
  func.func @transform_10(%arg0: i32) -> (i32, i32) {
    %c0_i32 = arith.constant 0 : i32
    %c0_i32_0 = arith.constant 0 : i32
    %c0_i32_1 = arith.constant 0 : i32
    return %c0_i32, %c0_i32_0 : i32, i32
  }
  func.func @transform_11(%arg0: i32) -> (i32, i32) {
    %c0_i32 = arith.constant 0 : i32
    %c0_i32_0 = arith.constant 0 : i32
    %c0_i32_1 = arith.constant 0 : i32
    return %c0_i32, %c0_i32_0 : i32, i32
  }
  func.func @transform_12(%arg0: i32) -> (i32, i32) {
    %c0_i32 = arith.constant 0 : i32
    %c0_i32_0 = arith.constant 0 : i32
    %c0_i32_1 = arith.constant 0 : i32
    return %c0_i32, %c0_i32_0 : i32, i32
  }
  func.func @transform_13(%arg0: i32) -> (i32, i32, i32) {
    %c0_i32 = arith.constant 0 : i32
    %c0_i32_0 = arith.constant 0 : i32
    %c0_i32_1 = arith.constant 0 : i32
    return %arg0, %c0_i32, %c0_i32_0 : i32, i32, i32
  }
}

</mosaic_0001>

<llo_original>
// kernel: mix_saca.1
$region0: #{mix_saca.1}
  #allocation0 [shape = 'u32[]', space=smem, size = 0x4, offset = 0x4, fixed_abs, tag = 'smem constant byte address 0x4 - core index']
  #allocation1 [shape = 'u32[144,128]{1,0:T(1,128)}', space=vmem, size = 0x12000, scoped, tag = 'internal scratch']
  #allocation2 [shape = 'f32[1,1]{1,0:T(1,128)S(6)}', space=smem, size = 0x200, scoped, tag = 'scoped memory for mix_saca.1']
  %s0 = inlined_call_operand.vmem [shape: f32[2,2,4,256], index: 0, kind: input, shape index: {}]
  %s1 = inlined_call_operand.vmem [shape: f32[8,4], index: 1, kind: input, shape index: {}]
  %s2 = inlined_call_operand.vmem [shape: f32[8,1], index: 2, kind: input, shape index: {}]
  %s3 = inlined_call_operand.vmem [shape: f32[4,8], index: 3, kind: input, shape index: {}]
  %s4 = inlined_call_operand.vmem [shape: f32[4,1], index: 4, kind: input, shape index: {}]
  %s5 = inlined_call_operand.vmem [shape: f32[4,8], index: 5, kind: input, shape index: {}]
  %s6 = inlined_call_operand.vmem [shape: f32[4,1], index: 6, kind: input, shape index: {}]
  %s7 = inlined_call_operand.vmem [shape: f32[16,256], index: 7, kind: input, shape index: {}]
  %s8 = inlined_call_operand.vmem [shape: f32[16,256], index: 8, kind: input, shape index: {}]
  %s9 = inlined_call_operand.vmem [shape: f32[512,256], index: 9, kind: input, shape index: {}]
  %s10 = inlined_call_operand.vmem [shape: f32[8,4], index: 10, kind: input, shape index: {}]
  %s11 = inlined_call_operand.vmem [shape: f32[8,4], index: 11, kind: input, shape index: {}]
  %s12 = inlined_call_operand.<no memory space> [shape: f32[1,1], index: 12, kind: input, shape index: {}]
  %s13 = inlined_call_operand.vmem [shape: f32[2,8,256], index: 13, kind: output, shape index: {}]
  %s14 = sld [smem:[#allocation0]]
  $region85: #{mix_saca.1} parent=0
    _
  %s16 = ssub.s32 1, %s14
  %s17 = scalar_select 0, %s16, %s14
  %18 = sst [smem:[#allocation2]] %s12
  loop: start=0, step=1, limit=4
  $region2: #{mix_saca.1} parent=0 // loop_pre_header
    _
  $region3: #{mix_saca.1} parent=0 // loop_header
    %s20 = sphi 0, %s24
    %p21 = scmp.ge.s32.totalorder %s20, 4
    %s30 = sphi 0, %s32
    %s33 = sphi 0, %s30
    %s34 = sphi 0, %s33
    %s50 = sphi 0, %s34
    %s54 = sphi 0, %s54
    %s56 = sphi 0, %s54
    %s57 = sphi 0, %s56
    %s71 = sphi 0, %s57
    %s75 = sphi 0, %s75
    %s77 = sphi 0, %s75
    %s78 = sphi 0, %s77
    %s92 = sphi 0, %s78
    %s96 = sphi 0, %s96
    %s98 = sphi 0, %s96
    %s99 = sphi 0, %s98
    %s113 = sphi 0, %s99
    %s117 = sphi 0, %s117
    %s119 = sphi 0, %s117
    %s120 = sphi 0, %s119
    %s134 = sphi 0, %s120
    %s138 = sphi 0, %s138
    %s140 = sphi 0, %s138
    %s141 = sphi 0, %s140
    %s155 = sphi 0, %s141
    %s159 = sphi 0, %s159
    %s161 = sphi 0, %s159
    %s162 = sphi 0, %s161
    %s176 = sphi 0, %s162
    %s180 = sphi 0, %s180
    %s182 = sphi 0, %s180
    %s183 = sphi 0, %s182
    %s197 = sphi 0, %s183
    %s201 = sphi 0, %s201
    %s203 = sphi 0, %s201
    %s204 = sphi 0, %s203
    %s218 = sphi 0, %s204
    %s222 = sphi 0, %s222
    %s224 = sphi 0, %s222
    %s225 = sphi 0, %s224
    %s239 = sphi 0, %s225
    %s243 = sphi 0, %s243
    %s245 = sphi 0, %s243
    %s246 = sphi 0, %s245
    %s260 = sphi 0, %s246
    %s264 = sphi 0, %s264
    %s266 = sphi 0, %s264
    %s267 = sphi 0, %s266
    %s281 = sphi 0, %s267
    %s285 = sphi 0, %s285
    %s287 = sphi 0, %s285
    %s288 = sphi 0, %s287
    %s302 = sphi 0, %s288
    %s308 = sphi 0, %s310
    %s311 = sphi 0, %s308
    %s312 = sphi 0, %s311
    %s328 = sphi 0, %s312
  $region4: #{mix_saca.1} parent=0 // loop_header_branch
    %23 = sbr.rel (%p21) target = $region8
  $region5: #{mix_saca.1} parent=0 // loop_body
    %s25 = ssub.s32 %s20, 1
    %s26 = ssub.s32 %s20, 2
    %s27 = sadd.s32 %s20, 1
    %s28 = ssub.s32 %s20, %s27
    %p29 = scmp.eq.s32.totalorder %s28, 0
    %s31 = sadd.s32 %s30, 1
    %s32 = scalar_select %p29, %s30, %s31
    %p35 = pneg %p29
    %p36 = scmp.eq.s32.totalorder %s20, 1
    %p37 = por %p35, %p36
    %p38 = scmp.ne.s32.totalorder %s30, %s33
    %p39 = scmp.eq.s32.totalorder %s20, 0
    %p40 = por %p38, %p39
    %p41 = scmp.ne.s32.totalorder %s30, %s33
    %p42 = scmp.eq.s32.totalorder %s25, 1
    %p43 = por %p41, %p42
    %p44 = scmp.ne.s32.totalorder %s33, %s34
    %p45 = scmp.eq.s32.totalorder %s25, 0
    %p46 = por %p44, %p45
    %p47 = scmp.ne.s32.totalorder %s33, %s34
    %p48 = scmp.eq.s32.totalorder %s26, 1
    %p49 = por %p47, %p48
    %p51 = scmp.ne.s32.totalorder %s34, %s50
    %p52 = scmp.eq.s32.totalorder %s26, 0
    %p53 = por %p51, %p52
    %s55 = sadd.s32 %s54, 1
    %p58 = scmp.eq.s32.totalorder %s20, 1
    %p59 = scmp.ne.s32.totalorder %s54, %s56
    %p60 = scmp.eq.s32.totalorder %s20, 0
    %p61 = por %p59, %p60
    %p62 = scmp.ne.s32.totalorder %s54, %s56
    %p63 = scmp.eq.s32.totalorder %s25, 1
    %p64 = por %p62, %p63
    %p65 = scmp.ne.s32.totalorder %s56, %s57
    %p66 = scmp.eq.s32.totalorder %s25, 0
    %p67 = por %p65, %p66
    %p68 = scmp.ne.s32.totalorder %s56, %s57
    %p69 = scmp.eq.s32.totalorder %s26, 1
    %p70 = por %p68, %p69
    %p72 = scmp.ne.s32.totalorder %s57, %s71
    %p73 = scmp.eq.s32.totalorder %s26, 0
    %p74 = por %p72, %p73
    %s76 = sadd.s32 %s75, 1
    %p79 = scmp.eq.s32.totalorder %s20, 1
    %p80 = scmp.ne.s32.totalorder %s75, %s77
    %p81 = scmp.eq.s32.totalorder %s20, 0
    %p82 = por %p80, %p81
    %p83 = scmp.ne.s32.totalorder %s75, %s77
    %p84 = scmp.eq.s32.totalorder %s25, 1
    %p85 = por %p83, %p84
    %p86 = scmp.ne.s32.totalorder %s77, %s78
    %p87 = scmp.eq.s32.totalorder %s25, 0
    %p88 = por %p86, %p87
    %p89 = scmp.ne.s32.totalorder %s77, %s78
    %p90 = scmp.eq.s32.totalorder %s26, 1
    %p91 = por %p89, %p90
    %p93 = scmp.ne.s32.totalorder %s78, %s92
    %p94 = scmp.eq.s32.totalorder %s26, 0
    %p95 = por %p93, %p94
    %s97 = sadd.s32 %s96, 1
    %p100 = scmp.eq.s32.totalorder %s20, 1
    %p101 = scmp.ne.s32.totalorder %s96, %s98
    %p102 = scmp.eq.s32.totalorder %s20, 0
    %p103 = por %p101, %p102
    %p104 = scmp.ne.s32.totalorder %s96, %s98
    %p105 = scmp.eq.s32.totalorder %s25, 1
    %p106 = por %p104, %p105
    %p107 = scmp.ne.s32.totalorder %s98, %s99
    %p108 = scmp.eq.s32.totalorder %s25, 0
    %p109 = por %p107, %p108
    %p110 = scmp.ne.s32.totalorder %s98, %s99
    %p111 = scmp.eq.s32.totalorder %s26, 1
    %p112 = por %p110, %p111
    %p114 = scmp.ne.s32.totalorder %s99, %s113
    %p115 = scmp.eq.s32.totalorder %s26, 0
    %p116 = por %p114, %p115
    %s118 = sadd.s32 %s117, 1
    %p121 = scmp.eq.s32.totalorder %s20, 1
    %p122 = scmp.ne.s32.totalorder %s117, %s119
    %p123 = scmp.eq.s32.totalorder %s20, 0
    %p124 = por %p122, %p123
    %p125 = scmp.ne.s32.totalorder %s117, %s119
    %p126 = scmp.eq.s32.totalorder %s25, 1
    %p127 = por %p125, %p126
    %p128 = scmp.ne.s32.totalorder %s119, %s120
    %p129 = scmp.eq.s32.totalorder %s25, 0
    %p130 = por %p128, %p129
    %p131 = scmp.ne.s32.totalorder %s119, %s120
    %p132 = scmp.eq.s32.totalorder %s26, 1
    %p133 = por %p131, %p132
    %p135 = scmp.ne.s32.totalorder %s120, %s134
    %p136 = scmp.eq.s32.totalorder %s26, 0
    %p137 = por %p135, %p136
    %s139 = sadd.s32 %s138, 1
    %p142 = scmp.eq.s32.totalorder %s20, 1
    %p143 = scmp.ne.s32.totalorder %s138, %s140
    %p144 = scmp.eq.s32.totalorder %s20, 0
    %p145 = por %p143, %p144
    %p146 = scmp.ne.s32.totalorder %s138, %s140
    %p147 = scmp.eq.s32.totalorder %s25, 1
    %p148 = por %p146, %p147
    %p149 = scmp.ne.s32.totalorder %s140, %s141
    %p150 = scmp.eq.s32.totalorder %s25, 0
    %p151 = por %p149, %p150
    %p152 = scmp.ne.s32.totalorder %s140, %s141
    %p153 = scmp.eq.s32.totalorder %s26, 1
    %p154 = por %p152, %p153
    %p156 = scmp.ne.s32.totalorder %s141, %s155
    %p157 = scmp.eq.s32.totalorder %s26, 0
    %p158 = por %p156, %p157
    %s160 = sadd.s32 %s159, 1
    %p163 = scmp.eq.s32.totalorder %s20, 1
    %p164 = scmp.ne.s32.totalorder %s159, %s161
    %p165 = scmp.eq.s32.totalorder %s20, 0
    %p166 = por %p164, %p165
    %p167 = scmp.ne.s32.totalorder %s159, %s161
    %p168 = scmp.eq.s32.totalorder %s25, 1
    %p169 = por %p167, %p168
    %p170 = scmp.ne.s32.totalorder %s161, %s162
    %p171 = scmp.eq.s32.totalorder %s25, 0
    %p172 = por %p170, %p171
    %p173 = scmp.ne.s32.totalorder %s161, %s162
    %p174 = scmp.eq.s32.totalorder %s26, 1
    %p175 = por %p173, %p174
    %p177 = scmp.ne.s32.totalorder %s162, %s176
    %p178 = scmp.eq.s32.totalorder %s26, 0
    %p179 = por %p177, %p178
    %s181 = sadd.s32 %s180, 1
    %p184 = scmp.eq.s32.totalorder %s20, 1
    %p185 = scmp.ne.s32.totalorder %s180, %s182
    %p186 = scmp.eq.s32.totalorder %s20, 0
    %p187 = por %p185, %p186
    %p188 = scmp.ne.s32.totalorder %s180, %s182
    %p189 = scmp.eq.s32.totalorder %s25, 1
    %p190 = por %p188, %p189
    %p191 = scmp.ne.s32.totalorder %s182, %s183
    %p192 = scmp.eq.s32.totalorder %s25, 0
    %p193 = por %p191, %p192
    %p194 = scmp.ne.s32.totalorder %s182, %s183
    %p195 = scmp.eq.s32.totalorder %s26, 1
    %p196 = por %p194, %p195
    %p198 = scmp.ne.s32.totalorder %s183, %s197
    %p199 = scmp.eq.s32.totalorder %s26, 0
    %p200 = por %p198, %p199
    %s202 = sadd.s32 %s201, 1
    %p205 = scmp.eq.s32.totalorder %s20, 1
    %p206 = scmp.ne.s32.totalorder %s201, %s203
    %p207 = scmp.eq.s32.totalorder %s20, 0
    %p208 = por %p206, %p207
    %p209 = scmp.ne.s32.totalorder %s201, %s203
    %p210 = scmp.eq.s32.totalorder %s25, 1
    %p211 = por %p209, %p210
    %p212 = scmp.ne.s32.totalorder %s203, %s204
    %p213 = scmp.eq.s32.totalorder %s25, 0
    %p214 = por %p212, %p213
    %p215 = scmp.ne.s32.totalorder %s203, %s204
    %p216 = scmp.eq.s32.totalorder %s26, 1
    %p217 = por %p215, %p216
    %p219 = scmp.ne.s32.totalorder %s204, %s218
    %p220 = scmp.eq.s32.totalorder %s26, 0
    %p221 = por %p219, %p220
    %s223 = sadd.s32 %s222, 1
    %p226 = scmp.eq.s32.totalorder %s20, 1
    %p227 = scmp.ne.s32.totalorder %s222, %s224
    %p228 = scmp.eq.s32.totalorder %s20, 0
    %p229 = por %p227, %p228
    %p230 = scmp.ne.s32.totalorder %s222, %s224
    %p231 = scmp.eq.s32.totalorder %s25, 1
    %p232 = por %p230, %p231
    %p233 = scmp.ne.s32.totalorder %s224, %s225
    %p234 = scmp.eq.s32.totalorder %s25, 0
    %p235 = por %p233, %p234
    %p236 = scmp.ne.s32.totalorder %s224, %s225
    %p237 = scmp.eq.s32.totalorder %s26, 1
    %p238 = por %p236, %p237
    %p240 = scmp.ne.s32.totalorder %s225, %s239
    %p241 = scmp.eq.s32.totalorder %s26, 0
    %p242 = por %p240, %p241
    %s244 = sadd.s32 %s243, 1
    %p247 = scmp.eq.s32.totalorder %s20, 1
    %p248 = scmp.ne.s32.totalorder %s243, %s245
    %p249 = scmp.eq.s32.totalorder %s20, 0
    %p250 = por %p248, %p249
    %p251 = scmp.ne.s32.totalorder %s243, %s245
    %p252 = scmp.eq.s32.totalorder %s25, 1
    %p253 = por %p251, %p252
    %p254 = scmp.ne.s32.totalorder %s245, %s246
    %p255 = scmp.eq.s32.totalorder %s25, 0
    %p256 = por %p254, %p255
    %p257 = scmp.ne.s32.totalorder %s245, %s246
    %p258 = scmp.eq.s32.totalorder %s26, 1
    %p259 = por %p257, %p258
    %p261 = scmp.ne.s32.totalorder %s246, %s260
    %p262 = scmp.eq.s32.totalorder %s26, 0
    %p263 = por %p261, %p262
    %s265 = sadd.s32 %s264, 1
    %p268 = scmp.eq.s32.totalorder %s20, 1
    %p269 = scmp.ne.s32.totalorder %s264, %s266
    %p270 = scmp.eq.s32.totalorder %s20, 0
    %p271 = por %p269, %p270
    %p272 = scmp.ne.s32.totalorder %s264, %s266
    %p273 = scmp.eq.s32.totalorder %s25, 1
    %p274 = por %p272, %p273
    %p275 = scmp.ne.s32.totalorder %s266, %s267
    %p276 = scmp.eq.s32.totalorder %s25, 0
    %p277 = por %p275, %p276
    %p278 = scmp.ne.s32.totalorder %s266, %s267
    %p279 = scmp.eq.s32.totalorder %s26, 1
    %p280 = por %p278, %p279
    %p282 = scmp.ne.s32.totalorder %s267, %s281
    %p283 = scmp.eq.s32.totalorder %s26, 0
    %p284 = por %p282, %p283
    %s286 = sadd.s32 %s285, 1
    %p289 = scmp.eq.s32.totalorder %s20, 1
    %p290 = scmp.ne.s32.totalorder %s285, %s287
    %p291 = scmp.eq.s32.totalorder %s20, 0
    %p292 = por %p290, %p291
    %p293 = scmp.ne.s32.totalorder %s285, %s287
    %p294 = scmp.eq.s32.totalorder %s25, 1
    %p295 = por %p293, %p294
    %p296 = scmp.ne.s32.totalorder %s287, %s288
    %p297 = scmp.eq.s32.totalorder %s25, 0
    %p298 = por %p296, %p297
    %p299 = scmp.ne.s32.totalorder %s287, %s288
    %p300 = scmp.eq.s32.totalorder %s26, 1
    %p301 = por %p299, %p300
    %p303 = scmp.ne.s32.totalorder %s288, %s302
    %p304 = scmp.eq.s32.totalorder %s26, 0
    %p305 = por %p303, %p304
    %s306 = ssub.s32 %s20, %s27
    %p307 = scmp.eq.s32.totalorder %s306, 0
    %s309 = sadd.s32 %s308, 1
    %s310 = scalar_select %p307, %s308, %s309
    %p313 = pneg %p307
    %p314 = scmp.eq.s32.totalorder %s20, 1
    %p315 = por %p313, %p314
    %p316 = scmp.ne.s32.totalorder %s308, %s311
    %p317 = scmp.eq.s32.totalorder %s20, 0
    %p318 = por %p316, %p317
    %p319 = scmp.ne.s32.totalorder %s308, %s311
    %p320 = scmp.eq.s32.totalorder %s25, 1
    %p321 = por %p319, %p320
    %p322 = scmp.ne.s32.totalorder %s311, %s312
    %p323 = scmp.eq.s32.totalorder %s25, 0
    %p324 = por %p322, %p323
    %p325 = scmp.ne.s32.totalorder %s311, %s312
    %p326 = scmp.eq.s32.totalorder %s26, 1
    %p327 = por %p325, %p326
    %p329 = scmp.ne.s32.totalorder %s312, %s328
    %p330 = scmp.eq.s32.totalorder %s26, 0
    %p331 = por %p329, %p330
    %p332 = scmp.le.s32.totalorder 1, %s20
    %p333 = scmp.lt.s32.totalorder %s20, 3
    %p334 = pnand %p332, %p333
    %p335 = pneg %p334
    // Predicated region
    $region9: #{mix_saca.1} parent=5 // pred_check
      _
    $region10: #{mix_saca.1} parent=5 // pred_check_branch
      %337 = sbr.rel (%p334) target = $region12
    $region11: #{mix_saca.1} parent=5 // pred_region
      %s338 = ssub.s32 %s20, 1
      // Predicated region
      $region13: #{mix_saca.1} parent=11 // pred_check
        %p339 = pneg %p67
      $region14: #{mix_saca.1} parent=11 // pred_check_branch
        %341 = sbr.rel (%p339) target = $region16
      $region15: #{mix_saca.1} parent=11 // pred_region
        _
      $region16: #{mix_saca.1} parent=11 // pred_fallthru
        _
      // Predicated region
      $region17: #{mix_saca.1} parent=11 // pred_check
        %p342 = pneg %p88
      $region18: #{mix_saca.1} parent=11 // pred_check_branch
        %344 = sbr.rel (%p342) target = $region20
      $region19: #{mix_saca.1} parent=11 // pred_region
        _
      $region20: #{mix_saca.1} parent=11 // pred_fallthru
        _
      // Predicated region
      $region21: #{mix_saca.1} parent=11 // pred_check
        %p345 = pneg %p109
      $region22: #{mix_saca.1} parent=11 // pred_check_branch
        %347 = sbr.rel (%p345) target = $region24
      $region23: #{mix_saca.1} parent=11 // pred_region
        _
      $region24: #{mix_saca.1} parent=11 // pred_fallthru
        _
      // Predicated region
      $region25: #{mix_saca.1} parent=11 // pred_check
        %p348 = pneg %p130
      $region26: #{mix_saca.1} parent=11 // pred_check_branch
        %350 = sbr.rel (%p348) target = $region28
      $region27: #{mix_saca.1} parent=11 // pred_region
        _
      $region28: #{mix_saca.1} parent=11 // pred_fallthru
        _
      // Predicated region
      $region29: #{mix_saca.1} parent=11 // pred_check
        %p351 = pneg %p151
      $region30: #{mix_saca.1} parent=11 // pred_check_branch
        %353 = sbr.rel (%p351) target = $region32
      $region31: #{mix_saca.1} parent=11 // pred_region
        _
      $region32: #{mix_saca.1} parent=11 // pred_fallthru
        _
      // Predicated region
      $region33: #{mix_saca.1} parent=11 // pred_check
        %p354 = pneg %p172
      $region34: #{mix_saca.1} parent=11 // pred_check_branch
        %356 = sbr.rel (%p354) target = $region36
      $region35: #{mix_saca.1} parent=11 // pred_region
        _
      $region36: #{mix_saca.1} parent=11 // pred_fallthru
        _
      // Predicated region
      $region37: #{mix_saca.1} parent=11 // pred_check
        %p357 = pneg %p193
      $region38: #{mix_saca.1} parent=11 // pred_check_branch
        %359 = sbr.rel (%p357) target = $region40
      $region39: #{mix_saca.1} parent=11 // pred_region
        _
      $region40: #{mix_saca.1} parent=11 // pred_fallthru
        _
      // Predicated region
      $region41: #{mix_saca.1} parent=11 // pred_check
        %p360 = pneg %p214
      $region42: #{mix_saca.1} parent=11 // pred_check_branch
        %362 = sbr.rel (%p360) target = $region44
      $region43: #{mix_saca.1} parent=11 // pred_region
        _
      $region44: #{mix_saca.1} parent=11 // pred_fallthru
        _
      // Predicated region
      $region45: #{mix_saca.1} parent=11 // pred_check
        %p363 = pneg %p235
      $region46: #{mix_saca.1} parent=11 // pred_check_branch
        %365 = sbr.rel (%p363) target = $region48
      $region47: #{mix_saca.1} parent=11 // pred_region
        _
      $region48: #{mix_saca.1} parent=11 // pred_fallthru
        _
      // Predicated region
      $region49: #{mix_saca.1} parent=11 // pred_check
        %p366 = pneg %p256
      $region50: #{mix_saca.1} parent=11 // pred_check_branch
        %368 = sbr.rel (%p366) target = $region52
      $region51: #{mix_saca.1} parent=11 // pred_region
        _
      $region52: #{mix_saca.1} parent=11 // pred_fallthru
        _
      // Predicated region
      $region53: #{mix_saca.1} parent=11 // pred_check
        %p369 = pneg %p277
      $region54: #{mix_saca.1} parent=11 // pred_check_branch
        %371 = sbr.rel (%p369) target = $region56
      $region55: #{mix_saca.1} parent=11 // pred_region
        _
      $region56: #{mix_saca.1} parent=11 // pred_fallthru
        _
      // Predicated region
      $region57: #{mix_saca.1} parent=11 // pred_check
        %p372 = pneg %p298
      $region58: #{mix_saca.1} parent=11 // pred_check_branch
        %374 = sbr.rel (%p372) target = $region60
      $region59: #{mix_saca.1} parent=11 // pred_region
        _
      $region60: #{mix_saca.1} parent=11 // pred_fallthru
        _
    $region12: #{mix_saca.1} parent=5 // pred_fallthru
      _
    %p375 = scmp.lt.s32.totalorder %s20, 2
    // Predicated region
    $region61: #{mix_saca.1} parent=5 // pred_check
      %p376 = pneg %p375
    $region62: #{mix_saca.1} parent=5 // pred_check_branch
      %378 = sbr.rel (%p376) target = $region64
    $region63: #{mix_saca.1} parent=5 // pred_region
      // Predicated region
      $region65: #{mix_saca.1} parent=63 // pred_check
        %p379 = pneg %p40
      $region66: #{mix_saca.1} parent=63 // pred_check_branch
        %381 = sbr.rel (%p379) target = $region68
      $region67: #{mix_saca.1} parent=63 // pred_region
        %p382 = scmp.lt.s32.totalorder %s20, 1
        %s383 = scalar_select %p382, %s20, 1
        %s384 = smul.addr %s383, 4
        %s385 = smul.addr %s384, 4
        %s386 = scalar_lea.vmem %s0, %s385
      $region68: #{mix_saca.1} parent=63 // pred_fallthru
        _
    $region64: #{mix_saca.1} parent=5 // pred_fallthru
      _
    %p387 = scmp.le.s32.totalorder 1, %s20
    %p388 = scmp.lt.s32.totalorder %s20, 3
    %p389 = pnand %p387, %p388
    %p390 = pneg %p389
    // Predicated region
    $region69: #{mix_saca.1} parent=5 // pred_check
      _
    $region70: #{mix_saca.1} parent=5 // pred_check_branch
      %392 = sbr.rel (%p389) target = $region72
    $region71: #{mix_saca.1} parent=5 // pred_region
      %s393 = ssub.s32 %s20, 1
      %p394 = scmp.lt.s32.totalorder %s25, 1
      %s395 = scalar_select %p394, %s25, 1
      %s396 = smul.addr %s395, 4
      %s397 = smul.addr %s396, 4
      %s398 = scalar_lea.vmem %s0, %s397
      %p399 = pneg %p46
      %p400 = pneg %p43
      %p401 = pneg %p67
      %p402 = pneg %p64
      %p403 = pneg %p88
      %p404 = pneg %p85
      %p405 = pneg %p109
      %p406 = pneg %p106
      %p407 = pneg %p130
      %p408 = pneg %p127
      %p409 = pneg %p151
      %p410 = pneg %p148
      %p411 = pneg %p172
      %p412 = pneg %p169
      %p413 = pneg %p193
      %p414 = pneg %p190
      %p415 = pneg %p214
      %p416 = pneg %p211
      %p417 = pneg %p235
      %p418 = pneg %p232
      %p419 = pneg %p256
      %p420 = pneg %p253
      %p421 = pneg %p277
      %p422 = pneg %p274
      %p423 = pneg %p298
      %p424 = pneg %p295
      %p425 = pneg %p324
      %p426 = pneg %p321
      %p427 = scmp.lt.s32.totalorder %s25, 1
      %s428 = scalar_select %p427, %s25, 1
      %s429 = smul.addr %s428, 2
      %s430 = smul.addr %s429, 8
      %s431 = scalar_lea.vmem %s13, %s430
      %p432 = scmp.lt.s32.totalorder %s25, 1
      %s433 = scalar_select %p432, %s25, 1
      %s434 = smul.addr %s433, 4
      %s435 = smul.addr %s434, 4
      %s436 = scalar_lea.vmem %s0, %s435
      %p437 = scmp.lt.s32.totalorder %s25, 1
      %s438 = scalar_select %p437, %s25, 1
      %s439 = smul.addr %s438, 2
      %s440 = smul.addr %s439, 8
      %s441 = scalar_lea.vmem %s13, %s440
      %v442 = vld [vmem:[%s436] sm:$0xff]
      %v443 = vld [vmem:[%s436 + $0x8] sm:$0xff]
      %v444 = vld [vmem:[%s7] sm:$0xff]
      %v445 = vld [vmem:[%s7 + $0x8] sm:$0xff]
      %v446 = vld [vmem:[%s7 + $0x10] sm:$0xff]
      %v447 = vld [vmem:[%s7 + $0x18] sm:$0xff]
      %v448 = vld [vmem:[%s8] sm:$0xff]
      %v449 = vld [vmem:[%s8 + $0x8] sm:$0xff]
      %v450 = vld [vmem:[%s8 + $0x10] sm:$0xff]
      %v451 = vld [vmem:[%s8 + $0x18] sm:$0xff]
      %v452 = vld [vmem:[%s1] sm:$0xff]
      %v453 = vld [vmem:[%s3] sm:$0xf]
      %v454 = vld [vmem:[%s5] sm:$0xf]
      %v455 = vld [vmem:[%s10] sm:$0xff]
      %v456 = vld [vmem:[%s11] sm:$0xff]
      %v457 = vld [vmem:[%s2] sm:$0xff]
      %v458 = vld [vmem:[%s4] sm:$0xf]
      %v459 = vld [vmem:[%s6] sm:$0xf]
      %v461 = vcombine.high %v442, %v442
      %463 = vmatprep.subr.mxu0 0.0
      %464 = vmatpush1.xpose.msra.mxu0 0.0
      %465 = vmatprep.subr.mxu0 0.0
      %466 = vmatpush1.xpose.msra.mxu0 0.0
      %467 = vmatprep.subr.mxu0 0.0
      %468 = vmatpush1.xpose.msra.mxu0 0.0
      %469 = vmatprep.subr.mxu0 0.0
      %470 = vmatpush1.xpose.msra.mxu0 0.0
      %471 = vmatprep.subr.mxu0 0.0
      %472 = vmatpush1.xpose.msra.mxu0 0.0
      %473 = vmatprep.subr.mxu0 0.0
      %474 = vmatpush1.xpose.msra.mxu0 0.0
      %475 = vmatprep.subr.mxu0 0.0
      %476 = vmatpush1.xpose.msra.mxu0 0.0
      %477 = vmatprep.subr.mxu0 0.0
      %478 = vmatpush1.xpose.msra.mxu0 0.0
      %479 = vmatprep.subr.mxu0 0.0
      %480 = vmatpush1.xpose.msra.mxu0 0.0
      %481 = vmatprep.subr.mxu0 0.0
      %482 = vmatpush1.xpose.msra.mxu0 0.0
      %483 = vmatprep.subr.mxu0 0.0
      %484 = vmatpush1.xpose.msra.mxu0 0.0
      %485 = vmatprep.subr.mxu0 0.0
      %486 = vmatpush1.xpose.msra.mxu0 0.0
      %487 = vmatprep.subr.mxu0 0.0
      %488 = vmatpush1.xpose.msra.mxu0 0.0
      %489 = vmatprep.subr.mxu0 0.0
      %490 = vmatpush1.xpose.msra.mxu0 0.0
      %491 = vmatprep.subr.mxu0 %v447
      %492 = vmatpush1.xpose.msra.mxu0 %v446
      %493 = vmatprep.subr.mxu0 %v445
      %494 = vmatpush1.xpose.msra.mxu0 %v444
      %495 = vmatprep.subr.mxu0 0.0
      %496 = vmatpush2.xpose.msra.mxu0 0.0
      %497 = vmatprep.subr.mxu0 0.0
      %498 = vmatpush2.xpose.msra.mxu0 0.0
      %499 = vmatprep.subr.mxu0 0.0
      %500 = vmatpush2.xpose.msra.mxu0 0.0
      %501 = vmatprep.subr.mxu0 0.0
      %502 = vmatpush2.xpose.msra.mxu0 0.0
      %503 = vmatprep.subr.mxu0 0.0
      %504 = vmatpush2.xpose.msra.mxu0 0.0
      %505 = vmatprep.subr.mxu0 0.0
      %506 = vmatpush2.xpose.msra.mxu0 0.0
      %507 = vmatprep.subr.mxu0 0.0
      %508 = vmatpush2.xpose.msra.mxu0 0.0
      %509 = vmatprep.subr.mxu0 0.0
      %510 = vmatpush2.xpose.msra.mxu0 0.0
      %511 = vmatprep.subr.mxu0 0.0
      %512 = vmatpush2.xpose.msra.mxu0 0.0
      %513 = vmatprep.subr.mxu0 0.0
      %514 = vmatpush2.xpose.msra.mxu0 0.0
      %515 = vmatprep.subr.mxu0 0.0
      %516 = vmatpush2.xpose.msra.mxu0 0.0
      %517 = vmatprep.subr.mxu0 0.0
      %518 = vmatpush2.xpose.msra.mxu0 0.0
      %519 = vmatprep.subr.mxu0 0.0
      %520 = vmatpush2.xpose.msra.mxu0 0.0
      %521 = vmatprep.subr.mxu0 0.0
      %522 = vmatpush2.xpose.msra.mxu0 0.0
      %523 = vmatprep.subr.mxu0 0.0
      %524 = vmatpush2.xpose.msra.mxu0 0.0
      %525 = vmatprep.subr.mxu0 0.0
      %526 = vmatpush2.xpose.msra.mxu0 0.0
      %527 = vmatprep.mubr.f32.mxu0 %v461
      %528 = vmatmul.mubr.f32.gmra.mxu0 %v442
      %v529 = vpop.f32.mrf.mxu0
      %v530 = vadd.f32 0.0, %v529
      %v531 = vpop.f32.mrf.mxu0
      %532 = vdwg.mxu0
      %v533 = vmul.f32 %v530, 0.0625
      %534 = vmatprep.subr.mxu0 0.0
      %535 = vmatpush1.xpose.msra.mxu0 0.0
      %536 = vmatprep.subr.mxu0 0.0
      %537 = vmatpush1.xpose.msra.mxu0 0.0
      %538 = vmatprep.subr.mxu0 0.0
      %539 = vmatpush1.xpose.msra.mxu0 0.0
      %540 = vmatprep.subr.mxu0 0.0
      %541 = vmatpush1.xpose.msra.mxu0 0.0
      %542 = vmatprep.subr.mxu0 0.0
      %543 = vmatpush1.xpose.msra.mxu0 0.0
      %544 = vmatprep.subr.mxu0 0.0
      %545 = vmatpush1.xpose.msra.mxu0 0.0
      %546 = vmatprep.subr.mxu0 0.0
      %547 = vmatpush1.xpose.msra.mxu0 0.0
      %548 = vmatprep.subr.mxu0 0.0
      %549 = vmatpush1.xpose.msra.mxu0 0.0
      %550 = vmatprep.subr.mxu0 0.0
      %551 = vmatpush1.xpose.msra.mxu0 0.0
      %552 = vmatprep.subr.mxu0 0.0
      %553 = vmatpush1.xpose.msra.mxu0 0.0
      %554 = vmatprep.subr.mxu0 0.0
      %555 = vmatpush1.xpose.msra.mxu0 0.0
      %556 = vmatprep.subr.mxu0 0.0
      %557 = vmatpush1.xpose.msra.mxu0 0.0
      %558 = vmatprep.subr.mxu0 0.0
      %559 = vmatpush1.xpose.msra.mxu0 0.0
      %560 = vmatprep.subr.mxu0 0.0
      %561 = vmatpush1.xpose.msra.mxu0 0.0
      %562 = vmatprep.subr.mxu0 %v451
      %563 = vmatpush1.xpose.msra.mxu0 %v450
      %564 = vmatprep.subr.mxu0 %v449
      %565 = vmatpush1.xpose.msra.mxu0 %v448
      %566 = vmatprep.subr.mxu0 0.0
      %567 = vmatpush2.xpose.msra.mxu0 0.0
      %568 = vmatprep.subr.mxu0 0.0
      %569 = vmatpush2.xpose.msra.mxu0 0.0
      %570 = vmatprep.subr.mxu0 0.0
      %571 = vmatpush2.xpose.msra.mxu0 0.0
      %572 = vmatprep.subr.mxu0 0.0
      %573 = vmatpush2.xpose.msra.mxu0 0.0
      %574 = vmatprep.subr.mxu0 0.0
      %575 = vmatpush2.xpose.msra.mxu0 0.0
      %576 = vmatprep.subr.mxu0 0.0
      %577 = vmatpush2.xpose.msra.mxu0 0.0
      %578 = vmatprep.subr.mxu0 0.0
      %579 = vmatpush2.xpose.msra.mxu0 0.0
      %580 = vmatprep.subr.mxu0 0.0
      %581 = vmatpush2.xpose.msra.mxu0 0.0
      %582 = vmatprep.subr.mxu0 0.0
      %583 = vmatpush2.xpose.msra.mxu0 0.0
      %584 = vmatprep.subr.mxu0 0.0
      %585 = vmatpush2.xpose.msra.mxu0 0.0
      %586 = vmatprep.subr.mxu0 0.0
      %587 = vmatpush2.xpose.msra.mxu0 0.0
      %588 = vmatprep.subr.mxu0 0.0
      %589 = vmatpush2.xpose.msra.mxu0 0.0
      %590 = vmatprep.subr.mxu0 0.0
      %591 = vmatpush2.xpose.msra.mxu0 0.0
      %592 = vmatprep.subr.mxu0 0.0
      %593 = vmatpush2.xpose.msra.mxu0 0.0
      %594 = vmatprep.subr.mxu0 0.0
      %595 = vmatpush2.xpose.msra.mxu0 0.0
      %596 = vmatprep.subr.mxu0 0.0
      %597 = vmatpush2.xpose.msra.mxu0 0.0
      %598 = vmatprep.mubr.f32.mxu0 %v461
      %599 = vmatmul.mubr.f32.gmra.mxu0 %v442
      %v600 = vpop.f32.mrf.mxu0
      %v601 = vadd.f32 0.0, %v600
      %v602 = vpop.f32.mrf.mxu0
      %603 = vdwg.mxu0
      %v604 = vmul.f32 %v601, 0.0625
      %606 = vset.pattern.permute.xlu0 0
      %607 = vperm.xlu0 %606, %v457
      %v608 = vpop.permute.xlu0 %607
      %vm610 = vcmask 31744
      %v612 = vsel %vm610, %v452, 0
      %vm614 = vcmask 1043456
      %v616 = vsel %vm614, %v533, 0
      %618 = vmatprep.subr.mxu0 0.0
      %619 = vmatpush1.msra.mxu0 0.0
      %620 = vmatprep.subr.mxu0 0.0
      %621 = vmatpush1.msra.mxu0 0.0
      %622 = vmatprep.subr.mxu0 0.0
      %623 = vmatpush1.msra.mxu0 0.0
      %624 = vmatprep.subr.mxu0 0.0
      %625 = vmatpush1.msra.mxu0 0.0
      %626 = vmatprep.subr.mxu0 0.0
      %627 = vmatpush1.msra.mxu0 0.0
      %628 = vmatprep.subr.mxu0 0.0
      %629 = vmatpush1.msra.mxu0 0.0
      %630 = vmatprep.subr.mxu0 0.0
      %631 = vmatpush1.msra.mxu0 0.0
      %632 = vmatprep.subr.mxu0 0.0
      %633 = vmatpush1.msra.mxu0 0.0
      %634 = vmatprep.subr.mxu0 0.0
      %635 = vmatpush1.msra.mxu0 0.0
      %636 = vmatprep.subr.mxu0 0.0
      %637 = vmatpush1.msra.mxu0 0.0
      %638 = vmatprep.subr.mxu0 0.0
      %639 = vmatpush1.msra.mxu0 0.0
      %640 = vmatprep.subr.mxu0 0.0
      %641 = vmatpush1.msra.mxu0 0.0
      %642 = vmatprep.subr.mxu0 0.0
      %643 = vmatpush1.msra.mxu0 0.0
      %644 = vmatprep.subr.mxu0 0.0
      %645 = vmatpush1.msra.mxu0 0.0
      %646 = vmatprep.subr.mxu0 0.0
      %647 = vmatpush1.msra.mxu0 0.0
      %648 = vmatprep.subr.mxu0 0.0
      %649 = vmatpush1.msra.mxu0 %v616
      %650 = vmatprep.subr.mxu0 0.0
      %651 = vmatpush2.msra.mxu0 0.0
      %652 = vmatprep.subr.mxu0 0.0
      %653 = vmatpush2.msra.mxu0 0.0
      %654 = vmatprep.subr.mxu0 0.0
      %655 = vmatpush2.msra.mxu0 0.0
      %656 = vmatprep.subr.mxu0 0.0
      %657 = vmatpush2.msra.mxu0 0.0
      %658 = vmatprep.subr.mxu0 0.0
      %659 = vmatpush2.msra.mxu0 0.0
      %660 = vmatprep.subr.mxu0 0.0
      %661 = vmatpush2.msra.mxu0 0.0
      %662 = vmatprep.subr.mxu0 0.0
      %663 = vmatpush2.msra.mxu0 0.0
      %664 = vmatprep.subr.mxu0 0.0
      %665 = vmatpush2.msra.mxu0 0.0
      %666 = vmatprep.subr.mxu0 0.0
      %667 = vmatpush2.msra.mxu0 0.0
      %668 = vmatprep.subr.mxu0 0.0
      %669 = vmatpush2.msra.mxu0 0.0
      %670 = vmatprep.subr.mxu0 0.0
      %671 = vmatpush2.msra.mxu0 0.0
      %672 = vmatprep.subr.mxu0 0.0
      %673 = vmatpush2.msra.mxu0 0.0
      %674 = vmatprep.subr.mxu0 0.0
      %675 = vmatpush2.msra.mxu0 0.0
      %676 = vmatprep.subr.mxu0 0.0
      %677 = vmatpush2.msra.mxu0 0.0
      %678 = vmatprep.subr.mxu0 0.0
      %679 = vmatpush2.msra.mxu0 0.0
      %680 = vmatprep.subr.mxu0 0.0
      %681 = vmatpush2.msra.mxu0 0.0
      %682 = vmatprep.mubr.f32.mxu0 0.0
      %683 = vmatmul.mubr.f32.gmra.mxu0 %v612
      %v684 = vpop.f32.mrf.mxu0
      %v685 = vadd.f32 %v608, %v684
      %v686 = vpop.f32.mrf.mxu0
      %687 = vdwg.mxu0
      %v689 = vsel %vm614, %v604, 0
      %691 = vmatprep.subr.mxu0 0.0
      %692 = vmatpush1.msra.mxu0 0.0
      %693 = vmatprep.subr.mxu0 0.0
      %694 = vmatpush1.msra.mxu0 0.0
      %695 = vmatprep.subr.mxu0 0.0
      %696 = vmatpush1.msra.mxu0 0.0
      %697 = vmatprep.subr.mxu0 0.0
      %698 = vmatpush1.msra.mxu0 0.0
      %699 = vmatprep.subr.mxu0 0.0
      %700 = vmatpush1.msra.mxu0 0.0
      %701 = vmatprep.subr.mxu0 0.0
      %702 = vmatpush1.msra.mxu0 0.0
      %703 = vmatprep.subr.mxu0 0.0
      %704 = vmatpush1.msra.mxu0 0.0
      %705 = vmatprep.subr.mxu0 0.0
      %706 = vmatpush1.msra.mxu0 0.0
      %707 = vmatprep.subr.mxu0 0.0
      %708 = vmatpush1.msra.mxu0 0.0
      %709 = vmatprep.subr.mxu0 0.0
      %710 = vmatpush1.msra.mxu0 0.0
      %711 = vmatprep.subr.mxu0 0.0
      %712 = vmatpush1.msra.mxu0 0.0
      %713 = vmatprep.subr.mxu0 0.0
      %714 = vmatpush1.msra.mxu0 0.0
      %715 = vmatprep.subr.mxu0 0.0
      %716 = vmatpush1.msra.mxu0 0.0
      %717 = vmatprep.subr.mxu0 0.0
      %718 = vmatpush1.msra.mxu0 0.0
      %719 = vmatprep.subr.mxu0 0.0
      %720 = vmatpush1.msra.mxu0 0.0
      %721 = vmatprep.subr.mxu0 0.0
      %722 = vmatpush1.msra.mxu0 %v689
      %723 = vmatprep.subr.mxu0 0.0
      %724 = vmatpush2.msra.mxu0 0.0
      %725 = vmatprep.subr.mxu0 0.0
      %726 = vmatpush2.msra.mxu0 0.0
      %727 = vmatprep.subr.mxu0 0.0
      %728 = vmatpush2.msra.mxu0 0.0
      %729 = vmatprep.subr.mxu0 0.0
      %730 = vmatpush2.msra.mxu0 0.0
      %731 = vmatprep.subr.mxu0 0.0
      %732 = vmatpush2.msra.mxu0 0.0
      %733 = vmatprep.subr.mxu0 0.0
      %734 = vmatpush2.msra.mxu0 0.0
      %735 = vmatprep.subr.mxu0 0.0
      %736 = vmatpush2.msra.mxu0 0.0
      %737 = vmatprep.subr.mxu0 0.0
      %738 = vmatpush2.msra.mxu0 0.0
      %739 = vmatprep.subr.mxu0 0.0
      %740 = vmatpush2.msra.mxu0 0.0
      %741 = vmatprep.subr.mxu0 0.0
      %742 = vmatpush2.msra.mxu0 0.0
      %743 = vmatprep.subr.mxu0 0.0
      %744 = vmatpush2.msra.mxu0 0.0
      %745 = vmatprep.subr.mxu0 0.0
      %746 = vmatpush2.msra.mxu0 0.0
      %747 = vmatprep.subr.mxu0 0.0
      %748 = vmatpush2.msra.mxu0 0.0
      %749 = vmatprep.subr.mxu0 0.0
      %750 = vmatpush2.msra.mxu0 0.0
      %751 = vmatprep.subr.mxu0 0.0
      %752 = vmatpush2.msra.mxu0 0.0
      %753 = vmatprep.subr.mxu0 0.0
      %754 = vmatpush2.msra.mxu0 0.0
      %755 = vmatprep.mubr.f32.mxu0 0.0
      %756 = vmatmul.mubr.f32.gmra.mxu0 %v612
      %v757 = vpop.f32.mrf.mxu0
      %v758 = vadd.f32 %v608, %v757
      %v759 = vpop.f32.mrf.mxu0
      %760 = vdwg.mxu0
      %v761 = vadd.f32 %v685, 3.0
      %v762 = vmax.f32 %v761, 0.0
      %v763 = vmin.f32 %v762, 6.0
      %v764 = vmul.f32 %v763, 0.16666667
      %v765 = vmul.f32 %v685, %v764
      %v766 = vadd.f32 %v758, 3.0
      %v767 = vmax.f32 %v766, 0.0
      %v768 = vmin.f32 %v767, 6.0
      %v769 = vmul.f32 %v768, 0.16666667
      %v770 = vmul.f32 %v758, %v769
      %772 = vset.pattern.permute.xlu0 0
      %773 = vperm.xlu0 %772, %v458
      %v774 = vpop.permute.xlu0 %773
      %vm776 = vcmask 64512
      %v778 = vsel %vm776, %v453, 0
      %780 = vmatprep.subr.mxu0 0.0
      %781 = vmatpush1.msra.mxu0 0.0
      %782 = vmatprep.subr.mxu0 0.0
      %783 = vmatpush1.msra.mxu0 0.0
      %784 = vmatprep.subr.mxu0 0.0
      %785 = vmatpush1.msra.mxu0 0.0
      %786 = vmatprep.subr.mxu0 0.0
      %787 = vmatpush1.msra.mxu0 0.0
      %788 = vmatprep.subr.mxu0 0.0
      %789 = vmatpush1.msra.mxu0 0.0
      %790 = vmatprep.subr.mxu0 0.0
      %791 = vmatpush1.msra.mxu0 0.0
      %792 = vmatprep.subr.mxu0 0.0
      %793 = vmatpush1.msra.mxu0 0.0
      %794 = vmatprep.subr.mxu0 0.0
      %795 = vmatpush1.msra.mxu0 0.0
      %796 = vmatprep.subr.mxu0 0.0
      %797 = vmatpush1.msra.mxu0 0.0
      %798 = vmatprep.subr.mxu0 0.0
      %799 = vmatpush1.msra.mxu0 0.0
      %800 = vmatprep.subr.mxu0 0.0
      %801 = vmatpush1.msra.mxu0 0.0
      %802 = vmatprep.subr.mxu0 0.0
      %803 = vmatpush1.msra.mxu0 0.0
      %804 = vmatprep.subr.mxu0 0.0
      %805 = vmatpush1.msra.mxu0 0.0
      %806 = vmatprep.subr.mxu0 0.0
      %807 = vmatpush1.msra.mxu0 0.0
      %808 = vmatprep.subr.mxu0 0.0
      %809 = vmatpush1.msra.mxu0 0.0
      %810 = vmatprep.subr.mxu0 0.0
      %811 = vmatpush1.msra.mxu0 %v765
      %812 = vmatprep.subr.mxu0 0.0
      %813 = vmatpush2.msra.mxu0 0.0
      %814 = vmatprep.subr.mxu0 0.0
      %815 = vmatpush2.msra.mxu0 0.0
      %816 = vmatprep.subr.mxu0 0.0
      %817 = vmatpush2.msra.mxu0 0.0
      %818 = vmatprep.subr.mxu0 0.0
      %819 = vmatpush2.msra.mxu0 0.0
      %820 = vmatprep.subr.mxu0 0.0
      %821 = vmatpush2.msra.mxu0 0.0
      %822 = vmatprep.subr.mxu0 0.0
      %823 = vmatpush2.msra.mxu0 0.0
      %824 = vmatprep.subr.mxu0 0.0
      %825 = vmatpush2.msra.mxu0 0.0
      %826 = vmatprep.subr.mxu0 0.0
      %827 = vmatpush2.msra.mxu0 0.0
      %828 = vmatprep.subr.mxu0 0.0
      %829 = vmatpush2.msra.mxu0 0.0
      %830 = vmatprep.subr.mxu0 0.0
      %831 = vmatpush2.msra.mxu0 0.0
      %832 = vmatprep.subr.mxu0 0.0
      %833 = vmatpush2.msra.mxu0 0.0
      %834 = vmatprep.subr.mxu0 0.0
      %835 = vmatpush2.msra.mxu0 0.0
      %836 = vmatprep.subr.mxu0 0.0
      %837 = vmatpush2.msra.mxu0 0.0
      %838 = vmatprep.subr.mxu0 0.0
      %839 = vmatpush2.msra.mxu0 0.0
      %840 = vmatprep.subr.mxu0 0.0
      %841 = vmatpush2.msra.mxu0 0.0
      %842 = vmatprep.subr.mxu0 0.0
      %843 = vmatpush2.msra.mxu0 0.0
      %844 = vmatprep.mubr.f32.mxu0 0.0
      %845 = vmatmul.mubr.f32.gmra.mxu0 %v778
      %v846 = vpop.f32.mrf.mxu0
      %v847 = vadd.f32 %v774, %v846
      %v848 = vpop.f32.mrf.mxu0
      %849 = vdwg.mxu0
      %v850 = vxor.u32 %v847, 2147483648
      %v851 = vmul.f32 %v850, 1.442695
      %v852 = vpow.pop %v851
      %v853 = vadd.f32 %v852, 1.0
      %v854 = vrcp.pop %v853
      %v855 = vmul.f32 1.0, %v854
      %857 = vset.pattern.permute.xlu0 0
      %858 = vperm.xlu0 %857, %v459
      %v859 = vpop.permute.xlu0 %858
      %v862 = vsel %vm776, %v454, 0
      %864 = vmatprep.subr.mxu0 0.0
      %865 = vmatpush1.msra.mxu0 0.0
      %866 = vmatprep.subr.mxu0 0.0
      %867 = vmatpush1.msra.mxu0 0.0
      %868 = vmatprep.subr.mxu0 0.0
      %869 = vmatpush1.msra.mxu0 0.0
      %870 = vmatprep.subr.mxu0 0.0
      %871 = vmatpush1.msra.mxu0 0.0
      %872 = vmatprep.subr.mxu0 0.0
      %873 = vmatpush1.msra.mxu0 0.0
      %874 = vmatprep.subr.mxu0 0.0
      %875 = vmatpush1.msra.mxu0 0.0
      %876 = vmatprep.subr.mxu0 0.0
      %877 = vmatpush1.msra.mxu0 0.0
      %878 = vmatprep.subr.mxu0 0.0
      %879 = vmatpush1.msra.mxu0 0.0
      %880 = vmatprep.subr.mxu0 0.0
      %881 = vmatpush1.msra.mxu0 0.0
      %882 = vmatprep.subr.mxu0 0.0
      %883 = vmatpush1.msra.mxu0 0.0
      %884 = vmatprep.subr.mxu0 0.0
      %885 = vmatpush1.msra.mxu0 0.0
      %886 = vmatprep.subr.mxu0 0.0
      %887 = vmatpush1.msra.mxu0 0.0
      %888 = vmatprep.subr.mxu0 0.0
      %889 = vmatpush1.msra.mxu0 0.0
      %890 = vmatprep.subr.mxu0 0.0
      %891 = vmatpush1.msra.mxu0 0.0
      %892 = vmatprep.subr.mxu0 0.0
      %893 = vmatpush1.msra.mxu0 0.0
      %894 = vmatprep.subr.mxu0 0.0
      %895 = vmatpush1.msra.mxu0 %v770
      %896 = vmatprep.subr.mxu0 0.0
      %897 = vmatpush2.msra.mxu0 0.0
      %898 = vmatprep.subr.mxu0 0.0
      %899 = vmatpush2.msra.mxu0 0.0
      %900 = vmatprep.subr.mxu0 0.0
      %901 = vmatpush2.msra.mxu0 0.0
      %902 = vmatprep.subr.mxu0 0.0
      %903 = vmatpush2.msra.mxu0 0.0
      %904 = vmatprep.subr.mxu0 0.0
      %905 = vmatpush2.msra.mxu0 0.0
      %906 = vmatprep.subr.mxu0 0.0
      %907 = vmatpush2.msra.mxu0 0.0
      %908 = vmatprep.subr.mxu0 0.0
      %909 = vmatpush2.msra.mxu0 0.0
      %910 = vmatprep.subr.mxu0 0.0
      %911 = vmatpush2.msra.mxu0 0.0
      %912 = vmatprep.subr.mxu0 0.0
      %913 = vmatpush2.msra.mxu0 0.0
      %914 = vmatprep.subr.mxu0 0.0
      %915 = vmatpush2.msra.mxu0 0.0
      %916 = vmatprep.subr.mxu0 0.0
      %917 = vmatpush2.msra.mxu0 0.0
      %918 = vmatprep.subr.mxu0 0.0
      %919 = vmatpush2.msra.mxu0 0.0
      %920 = vmatprep.subr.mxu0 0.0
      %921 = vmatpush2.msra.mxu0 0.0
      %922 = vmatprep.subr.mxu0 0.0
      %923 = vmatpush2.msra.mxu0 0.0
      %924 = vmatprep.subr.mxu0 0.0
      %925 = vmatpush2.msra.mxu0 0.0
      %926 = vmatprep.subr.mxu0 0.0
      %927 = vmatpush2.msra.mxu0 0.0
      %928 = vmatprep.mubr.f32.mxu0 0.0
      %929 = vmatmul.mubr.f32.gmra.mxu0 %v862
      %v930 = vpop.f32.mrf.mxu0
      %v931 = vadd.f32 %v859, %v930
      %v932 = vpop.f32.mrf.mxu0
      %933 = vdwg.mxu0
      %v934 = vxor.u32 %v931, 2147483648
      %v935 = vmul.f32 %v934, 1.442695
      %v936 = vpow.pop %v935
      %v937 = vadd.f32 %v936, 1.0
      %v938 = vrcp.pop %v937
      %v939 = vmul.f32 1.0, %v938
      %vm940 = vcmask 130048
      %v942 = vsel %vm940, %v855, 0
      %944 = vmatprep.subr.mxu0 0.0
      %945 = vmatpush1.msra.mxu0 0.0
      %946 = vmatprep.subr.mxu0 0.0
      %947 = vmatpush1.msra.mxu0 0.0
      %948 = vmatprep.subr.mxu0 0.0
      %949 = vmatpush1.msra.mxu0 0.0
      %950 = vmatprep.subr.mxu0 0.0
      %951 = vmatpush1.msra.mxu0 0.0
      %952 = vmatprep.subr.mxu0 0.0
      %953 = vmatpush1.msra.mxu0 0.0
      %954 = vmatprep.subr.mxu0 0.0
      %955 = vmatpush1.msra.mxu0 0.0
      %956 = vmatprep.subr.mxu0 0.0
      %957 = vmatpush1.msra.mxu0 0.0
      %958 = vmatprep.subr.mxu0 0.0
      %959 = vmatpush1.msra.mxu0 0.0
      %960 = vmatprep.subr.mxu0 0.0
      %961 = vmatpush1.msra.mxu0 0.0
      %962 = vmatprep.subr.mxu0 0.0
      %963 = vmatpush1.msra.mxu0 0.0
      %964 = vmatprep.subr.mxu0 0.0
      %965 = vmatpush1.msra.mxu0 0.0
      %966 = vmatprep.subr.mxu0 0.0
      %967 = vmatpush1.msra.mxu0 0.0
      %968 = vmatprep.subr.mxu0 0.0
      %969 = vmatpush1.msra.mxu0 0.0
      %970 = vmatprep.subr.mxu0 0.0
      %971 = vmatpush1.msra.mxu0 0.0
      %972 = vmatprep.subr.mxu0 %v447
      %973 = vmatpush1.msra.mxu0 %v446
      %974 = vmatprep.subr.mxu0 %v445
      %975 = vmatpush1.msra.mxu0 %v444
      %976 = vmatprep.subr.mxu0 0.0
      %977 = vmatpush2.msra.mxu0 0.0
      %978 = vmatprep.subr.mxu0 0.0
      %979 = vmatpush2.msra.mxu0 0.0
      %980 = vmatprep.subr.mxu0 0.0
      %981 = vmatpush2.msra.mxu0 0.0
      %982 = vmatprep.subr.mxu0 0.0
      %983 = vmatpush2.msra.mxu0 0.0
      %984 = vmatprep.subr.mxu0 0.0
      %985 = vmatpush2.msra.mxu0 0.0
      %986 = vmatprep.subr.mxu0 0.0
      %987 = vmatpush2.msra.mxu0 0.0
      %988 = vmatprep.subr.mxu0 0.0
      %989 = vmatpush2.msra.mxu0 0.0
      %990 = vmatprep.subr.mxu0 0.0
      %991 = vmatpush2.msra.mxu0 0.0
      %992 = vmatprep.subr.mxu0 0.0
      %993 = vmatpush2.msra.mxu0 0.0
      %994 = vmatprep.subr.mxu0 0.0
      %995 = vmatpush2.msra.mxu0 0.0
      %996 = vmatprep.subr.mxu0 0.0
      %997 = vmatpush2.msra.mxu0 0.0
      %998 = vmatprep.subr.mxu0 0.0
      %999 = vmatpush2.msra.mxu0 0.0
      %1000 = vmatprep.subr.mxu0 0.0
      %1001 = vmatpush2.msra.mxu0 0.0
      %1002 = vmatprep.subr.mxu0 0.0
      %1003 = vmatpush2.msra.mxu0 0.0
      %1004 = vmatprep.subr.mxu0 0.0
      %1005 = vmatpush2.msra.mxu0 0.0
      %1006 = vmatprep.subr.mxu0 0.0
      %1007 = vmatpush2.msra.mxu0 0.0
      %1008 = vmatprep.mubr.f32.mxu0 0.0
      %1009 = vmatmul.mubr.f32.gmra.mxu0 %v942
      %v1010 = vpop.f32.mrf.mxu0
      %v1011 = vadd.f32 0.0, %v1010
      %v1012 = vpop.f32.mrf.mxu0
      %v1013 = vadd.f32 0.0, %v1012
      %1014 = vdwg.mxu0
      %v1016 = vsel %vm940, %v939, 0
      %1018 = vmatprep.subr.mxu0 0.0
      %1019 = vmatpush1.msra.mxu0 0.0
      %1020 = vmatprep.subr.mxu0 0.0
      %1021 = vmatpush1.msra.mxu0 0.0
      %1022 = vmatprep.subr.mxu0 0.0
      %1023 = vmatpush1.msra.mxu0 0.0
      %1024 = vmatprep.subr.mxu0 0.0
      %1025 = vmatpush1.msra.mxu0 0.0
      %1026 = vmatprep.subr.mxu0 0.0
      %1027 = vmatpush1.msra.mxu0 0.0
      %1028 = vmatprep.subr.mxu0 0.0
      %1029 = vmatpush1.msra.mxu0 0.0
      %1030 = vmatprep.subr.mxu0 0.0
      %1031 = vmatpush1.msra.mxu0 0.0
      %1032 = vmatprep.subr.mxu0 0.0
      %1033 = vmatpush1.msra.mxu0 0.0
      %1034 = vmatprep.subr.mxu0 0.0
      %1035 = vmatpush1.msra.mxu0 0.0
      %1036 = vmatprep.subr.mxu0 0.0
      %1037 = vmatpush1.msra.mxu0 0.0
      %1038 = vmatprep.subr.mxu0 0.0
      %1039 = vmatpush1.msra.mxu0 0.0
      %1040 = vmatprep.subr.mxu0 0.0
      %1041 = vmatpush1.msra.mxu0 0.0
      %1042 = vmatprep.subr.mxu0 0.0
      %1043 = vmatpush1.msra.mxu0 0.0
      %1044 = vmatprep.subr.mxu0 0.0
      %1045 = vmatpush1.msra.mxu0 0.0
      %1046 = vmatprep.subr.mxu0 %v451
      %1047 = vmatpush1.msra.mxu0 %v450
      %1048 = vmatprep.subr.mxu0 %v449
      %1049 = vmatpush1.msra.mxu0 %v448
      %1050 = vmatprep.subr.mxu0 0.0
      %1051 = vmatpush2.msra.mxu0 0.0
      %1052 = vmatprep.subr.mxu0 0.0
      %1053 = vmatpush2.msra.mxu0 0.0
      %1054 = vmatprep.subr.mxu0 0.0
      %1055 = vmatpush2.msra.mxu0 0.0
      %1056 = vmatprep.subr.mxu0 0.0
      %1057 = vmatpush2.msra.mxu0 0.0
      %1058 = vmatprep.subr.mxu0 0.0
      %1059 = vmatpush2.msra.mxu0 0.0
      %1060 = vmatprep.subr.mxu0 0.0
      %1061 = vmatpush2.msra.mxu0 0.0
      %1062 = vmatprep.subr.mxu0 0.0
      %1063 = vmatpush2.msra.mxu0 0.0
      %1064 = vmatprep.subr.mxu0 0.0
      %1065 = vmatpush2.msra.mxu0 0.0
      %1066 = vmatprep.subr.mxu0 0.0
      %1067 = vmatpush2.msra.mxu0 0.0
      %1068 = vmatprep.subr.mxu0 0.0
      %1069 = vmatpush2.msra.mxu0 0.0
      %1070 = vmatprep.subr.mxu0 0.0
      %1071 = vmatpush2.msra.mxu0 0.0
      %1072 = vmatprep.subr.mxu0 0.0
      %1073 = vmatpush2.msra.mxu0 0.0
      %1074 = vmatprep.subr.mxu0 0.0
      %1075 = vmatpush2.msra.mxu0 0.0
      %1076 = vmatprep.subr.mxu0 0.0
      %1077 = vmatpush2.msra.mxu0 0.0
      %1078 = vmatprep.subr.mxu0 0.0
      %1079 = vmatpush2.msra.mxu0 0.0
      %1080 = vmatprep.subr.mxu0 0.0
      %1081 = vmatpush2.msra.mxu0 0.0
      %1082 = vmatprep.mubr.f32.mxu0 0.0
      %1083 = vmatmul.mubr.f32.gmra.mxu0 %v1016
      %v1084 = vpop.f32.mrf.mxu0
      %v1085 = vadd.f32 0.0, %v1084
      %v1086 = vpop.f32.mrf.mxu0
      %v1087 = vadd.f32 0.0, %v1086
      %1088 = vdwg.mxu0
      %v1089 = vmul.f32 %v1011, %v1085
      %v1090 = vmul.f32 %v1013, %v1087
      %v1091 = vadd.f32 %v1089, 1.0
      %v1092 = vadd.f32 %v1090, 1.0
      %v1095 = vcombine.low %v1091, %v1092
      %v1097 = vmul.f32 %v442, %v1095
      %v1099 = vcombine.high %v443, %v443
      %v1101 = vsel %vm614, %v443, -inf
      %v1102 = vrot.slane %v1101, 4
      %v1103 = vmax.f32 %v1101, %v1102
      %v1104 = vrot.slane %v1103, 2
      %v1105 = vmax.f32 %v1103, %v1104
      %v1106 = vrot.slane %v1105, 1
      %v1107 = vmax.f32 %v1105, %v1106
      %v1108 = vsel %vm614, %v1099, -inf
      %v1109 = vrot.slane %v1108, 4
      %v1110 = vmax.f32 %v1108, %v1109
      %v1111 = vrot.slane %v1110, 2
      %v1112 = vmax.f32 %v1110, %v1111
      %v1113 = vrot.slane %v1112, 1
      %v1114 = vmax.f32 %v1112, %v1113
      %v1115 = vsel %vm614, %v443, 0.0
      %v1116 = vrot.slane %v1115, 4
      %v1117 = vadd.f32 %v1115, %v1116
      %v1118 = vrot.slane %v1117, 2
      %v1119 = vadd.f32 %v1117, %v1118
      %v1120 = vrot.slane %v1119, 1
      %v1121 = vadd.f32 %v1119, %v1120
      %v1122 = vsel %vm614, %v1099, 0.0
      %v1123 = vrot.slane %v1122, 4
      %v1124 = vadd.f32 %v1122, %v1123
      %v1125 = vrot.slane %v1124, 2
      %v1126 = vadd.f32 %v1124, %v1125
      %v1127 = vrot.slane %v1126, 1
      %v1128 = vadd.f32 %v1126, %v1127
      %v1129 = vrcp.pop 4.0
      %v1130 = vmul.f32 %v1121, %v1129
      %v1131 = vmul.f32 %v1128, %v1129
      %v1132 = vld [vmem:[%s9] sm:$0xff]
      %v1133 = vld [vmem:[%s9 + $0x8] sm:$0xff]
      %v1134 = vld [vmem:[%s9 + $0x10] sm:$0xff]
      %v1135 = vld [vmem:[%s9 + $0x18] sm:$0xff]
      %v1136 = vld [vmem:[%s9 + $0x20] sm:$0xff]
      %v1137 = vld [vmem:[%s9 + $0x28] sm:$0xff]
      %v1138 = vld [vmem:[%s9 + $0x30] sm:$0xff]
      %v1139 = vld [vmem:[%s9 + $0x38] sm:$0xff]
      %v1140 = vld [vmem:[%s9 + $0x40] sm:$0xff]
      %v1141 = vld [vmem:[%s9 + $0x48] sm:$0xff]
      %v1142 = vld [vmem:[%s9 + $0x50] sm:$0xff]
      %v1143 = vld [vmem:[%s9 + $0x58] sm:$0xff]
      %v1144 = vld [vmem:[%s9 + $0x60] sm:$0xff]
      %v1145 = vld [vmem:[%s9 + $0x68] sm:$0xff]
      %v1146 = vld [vmem:[%s9 + $0x70] sm:$0xff]
      %v1147 = vld [vmem:[%s9 + $0x78] sm:$0xff]
      %v1148 = vld [vmem:[%s9 + $0x80] sm:$0xff]
      %v1149 = vld [vmem:[%s9 + $0x88] sm:$0xff]
      %v1150 = vld [vmem:[%s9 + $0x90] sm:$0xff]
      %v1151 = vld [vmem:[%s9 + $0x98] sm:$0xff]
      %v1152 = vld [vmem:[%s9 + $0xa0] sm:$0xff]
      %v1153 = vld [vmem:[%s9 + $0xa8] sm:$0xff]
      %v1154 = vld [vmem:[%s9 + $0xb0] sm:$0xff]
      %v1155 = vld [vmem:[%s9 + $0xb8] sm:$0xff]
      %v1156 = vld [vmem:[%s9 + $0xc0] sm:$0xff]
      %v1157 = vld [vmem:[%s9 + $0xc8] sm:$0xff]
      %v1158 = vld [vmem:[%s9 + $0xd0] sm:$0xff]
      %v1159 = vld [vmem:[%s9 + $0xd8] sm:$0xff]
      %v1160 = vld [vmem:[%s9 + $0xe0] sm:$0xff]
      %v1161 = vld [vmem:[%s9 + $0xe8] sm:$0xff]
      %v1162 = vld [vmem:[%s9 + $0xf0] sm:$0xff]
      %v1163 = vld [vmem:[%s9 + $0xf8] sm:$0xff]
      %v1164 = vld [vmem:[%s9 + $0x100] sm:$0xff]
      %v1165 = vld [vmem:[%s9 + $0x108] sm:$0xff]
      %v1166 = vld [vmem:[%s9 + $0x110] sm:$0xff]
      %v1167 = vld [vmem:[%s9 + $0x118] sm:$0xff]
      %v1168 = vld [vmem:[%s9 + $0x120] sm:$0xff]
      %v1169 = vld [vmem:[%s9 + $0x128] sm:$0xff]
      %v1170 = vld [vmem:[%s9 + $0x130] sm:$0xff]
      %v1171 = vld [vmem:[%s9 + $0x138] sm:$0xff]
      %v1172 = vld [vmem:[%s9 + $0x140] sm:$0xff]
      %v1173 = vld [vmem:[%s9 + $0x148] sm:$0xff]
      %v1174 = vld [vmem:[%s9 + $0x150] sm:$0xff]
      %v1175 = vld [vmem:[%s9 + $0x158] sm:$0xff]
      %v1176 = vld [vmem:[%s9 + $0x160] sm:$0xff]
      %v1177 = vld [vmem:[%s9 + $0x168] sm:$0xff]
      %v1178 = vld [vmem:[%s9 + $0x170] sm:$0xff]
      %v1179 = vld [vmem:[%s9 + $0x178] sm:$0xff]
      %v1180 = vld [vmem:[%s9 + $0x180] sm:$0xff]
      %v1181 = vld [vmem:[%s9 + $0x188] sm:$0xff]
      %v1182 = vld [vmem:[%s9 + $0x190] sm:$0xff]
      %v1183 = vld [vmem:[%s9 + $0x198] sm:$0xff]
      %v1184 = vld [vmem:[%s9 + $0x1a0] sm:$0xff]
      %v1185 = vld [vmem:[%s9 + $0x1a8] sm:$0xff]
      %v1186 = vld [vmem:[%s9 + $0x1b0] sm:$0xff]
      %v1187 = vld [vmem:[%s9 + $0x1b8] sm:$0xff]
      %v1188 = vld [vmem:[%s9 + $0x1c0] sm:$0xff]
      %v1189 = vld [vmem:[%s9 + $0x1c8] sm:$0xff]
      %v1190 = vld [vmem:[%s9 + $0x1d0] sm:$0xff]
      %v1191 = vld [vmem:[%s9 + $0x1d8] sm:$0xff]
      %v1192 = vld [vmem:[%s9 + $0x1e0] sm:$0xff]
      %v1193 = vld [vmem:[%s9 + $0x1e8] sm:$0xff]
      %v1194 = vld [vmem:[%s9 + $0x1f0] sm:$0xff]
      %v1195 = vld [vmem:[%s9 + $0x1f8] sm:$0xff]
      %v1196 = vld [vmem:[%s9 + $0x200] sm:$0xff]
      %v1197 = vld [vmem:[%s9 + $0x208] sm:$0xff]
      %v1198 = vld [vmem:[%s9 + $0x210] sm:$0xff]
      %v1199 = vld [vmem:[%s9 + $0x218] sm:$0xff]
      %v1200 = vld [vmem:[%s9 + $0x220] sm:$0xff]
      %v1201 = vld [vmem:[%s9 + $0x228] sm:$0xff]
      %v1202 = vld [vmem:[%s9 + $0x230] sm:$0xff]
      %v1203 = vld [vmem:[%s9 + $0x238] sm:$0xff]
      %v1204 = vld [vmem:[%s9 + $0x240] sm:$0xff]
      %v1205 = vld [vmem:[%s9 + $0x248] sm:$0xff]
      %v1206 = vld [vmem:[%s9 + $0x250] sm:$0xff]
      %v1207 = vld [vmem:[%s9 + $0x258] sm:$0xff]
      %v1208 = vld [vmem:[%s9 + $0x260] sm:$0xff]
      %v1209 = vld [vmem:[%s9 + $0x268] sm:$0xff]
      %v1210 = vld [vmem:[%s9 + $0x270] sm:$0xff]
      %v1211 = vld [vmem:[%s9 + $0x278] sm:$0xff]
      %v1212 = vld [vmem:[%s9 + $0x280] sm:$0xff]
      %v1213 = vld [vmem:[%s9 + $0x288] sm:$0xff]
      %v1214 = vld [vmem:[%s9 + $0x290] sm:$0xff]
      %v1215 = vld [vmem:[%s9 + $0x298] sm:$0xff]
      %v1216 = vld [vmem:[%s9 + $0x2a0] sm:$0xff]
      %v1217 = vld [vmem:[%s9 + $0x2a8] sm:$0xff]
      %v1218 = vld [vmem:[%s9 + $0x2b0] sm:$0xff]
      %v1219 = vld [vmem:[%s9 + $0x2b8] sm:$0xff]
      %v1220 = vld [vmem:[%s9 + $0x2c0] sm:$0xff]
      %v1221 = vld [vmem:[%s9 + $0x2c8] sm:$0xff]
      %v1222 = vld [vmem:[%s9 + $0x2d0] sm:$0xff]
      %v1223 = vld [vmem:[%s9 + $0x2d8] sm:$0xff]
      %v1224 = vld [vmem:[%s9 + $0x2e0] sm:$0xff]
      %v1225 = vld [vmem:[%s9 + $0x2e8] sm:$0xff]
      %v1226 = vld [vmem:[%s9 + $0x2f0] sm:$0xff]
      %v1227 = vld [vmem:[%s9 + $0x2f8] sm:$0xff]
      %v1228 = vld [vmem:[%s9 + $0x300] sm:$0xff]
      %v1229 = vld [vmem:[%s9 + $0x308] sm:$0xff]
      %v1230 = vld [vmem:[%s9 + $0x310] sm:$0xff]
      %v1231 = vld [vmem:[%s9 + $0x318] sm:$0xff]
      %v1232 = vld [vmem:[%s9 + $0x320] sm:$0xff]
      %v1233 = vld [vmem:[%s9 + $0x328] sm:$0xff]
      %v1234 = vld [vmem:[%s9 + $0x330] sm:$0xff]
      %v1235 = vld [vmem:[%s9 + $0x338] sm:$0xff]
      %v1236 = vld [vmem:[%s9 + $0x340] sm:$0xff]
      %v1237 = vld [vmem:[%s9 + $0x348] sm:$0xff]
      %v1238 = vld [vmem:[%s9 + $0x350] sm:$0xff]
      %v1239 = vld [vmem:[%s9 + $0x358] sm:$0xff]
      %v1240 = vld [vmem:[%s9 + $0x360] sm:$0xff]
      %v1241 = vld [vmem:[%s9 + $0x368] sm:$0xff]
      %v1242 = vld [vmem:[%s9 + $0x370] sm:$0xff]
      %v1243 = vld [vmem:[%s9 + $0x378] sm:$0xff]
      %v1244 = vld [vmem:[%s9 + $0x380] sm:$0xff]
      %v1245 = vld [vmem:[%s9 + $0x388] sm:$0xff]
      %v1246 = vld [vmem:[%s9 + $0x390] sm:$0xff]
      %v1247 = vld [vmem:[%s9 + $0x398] sm:$0xff]
      %v1248 = vld [vmem:[%s9 + $0x3a0] sm:$0xff]
      %v1249 = vld [vmem:[%s9 + $0x3a8] sm:$0xff]
      %v1250 = vld [vmem:[%s9 + $0x3b0] sm:$0xff]
      %v1251 = vld [vmem:[%s9 + $0x3b8] sm:$0xff]
      %v1252 = vld [vmem:[%s9 + $0x3c0] sm:$0xff]
      %v1253 = vld [vmem:[%s9 + $0x3c8] sm:$0xff]
      %v1254 = vld [vmem:[%s9 + $0x3d0] sm:$0xff]
      %v1255 = vld [vmem:[%s9 + $0x3d8] sm:$0xff]
      %v1256 = vld [vmem:[%s9 + $0x3e0] sm:$0xff]
      %v1257 = vld [vmem:[%s9 + $0x3e8] sm:$0xff]
      %v1258 = vld [vmem:[%s9 + $0x3f0] sm:$0xff]
      %v1259 = vld [vmem:[%s9 + $0x3f8] sm:$0xff]
      %s1260 = sld [smem:[#allocation2]]
      %v1261 = vstv %s1260
      %1262 = vmatprep.subr.mxu0 %v1163
      %1263 = vmatpush1.msra.mxu0 %v1162
      %1264 = vmatprep.subr.mxu0 %v1161
      %1265 = vmatpush1.msra.mxu0 %v1160
      %1266 = vmatprep.subr.mxu0 %v1159
      %1267 = vmatpush1.msra.mxu0 %v1158
      %1268 = vmatprep.subr.mxu0 %v1157
      %1269 = vmatpush1.msra.mxu0 %v1156
      %1270 = vmatprep.subr.mxu0 %v1155
      %1271 = vmatpush1.msra.mxu0 %v1154
      %1272 = vmatprep.subr.mxu0 %v1153
      %1273 = vmatpush1.msra.mxu0 %v1152
      %1274 = vmatprep.subr.mxu0 %v1151
      %1275 = vmatpush1.msra.mxu0 %v1150
      %1276 = vmatprep.subr.mxu0 %v1149
      %1277 = vmatpush1.msra.mxu0 %v1148
      %1278 = vmatprep.subr.mxu0 %v1147
      %1279 = vmatpush1.msra.mxu0 %v1146
      %1280 = vmatprep.subr.mxu0 %v1145
      %1281 = vmatpush1.msra.mxu0 %v1144
      %1282 = vmatprep.subr.mxu0 %v1143
      %1283 = vmatpush1.msra.mxu0 %v1142
      %1284 = vmatprep.subr.mxu0 %v1141
      %1285 = vmatpush1.msra.mxu0 %v1140
      %1286 = vmatprep.subr.mxu0 %v1139
      %1287 = vmatpush1.msra.mxu0 %v1138
      %1288 = vmatprep.subr.mxu0 %v1137
      %1289 = vmatpush1.msra.mxu0 %v1136
      %1290 = vmatprep.subr.mxu0 %v1135
      %1291 = vmatpush1.msra.mxu0 %v1134
      %1292 = vmatprep.subr.mxu0 %v1133
      %1293 = vmatpush1.msra.mxu0 %v1132
      %1294 = vmatprep.subr.mxu0 %v1195
      %1295 = vmatpush2.msra.mxu0 %v1194
      %1296 = vmatprep.subr.mxu0 %v1193
      %1297 = vmatpush2.msra.mxu0 %v1192
      %1298 = vmatprep.subr.mxu0 %v1191
      %1299 = vmatpush2.msra.mxu0 %v1190
      %1300 = vmatprep.subr.mxu0 %v1189
      %1301 = vmatpush2.msra.mxu0 %v1188
      %1302 = vmatprep.subr.mxu0 %v1187
      %1303 = vmatpush2.msra.mxu0 %v1186
      %1304 = vmatprep.subr.mxu0 %v1185
      %1305 = vmatpush2.msra.mxu0 %v1184
      %1306 = vmatprep.subr.mxu0 %v1183
      %1307 = vmatpush2.msra.mxu0 %v1182
      %1308 = vmatprep.subr.mxu0 %v1181
      %1309 = vmatpush2.msra.mxu0 %v1180
      %1310 = vmatprep.subr.mxu0 %v1179
      %1311 = vmatpush2.msra.mxu0 %v1178
      %1312 = vmatprep.subr.mxu0 %v1177
      %1313 = vmatpush2.msra.mxu0 %v1176
      %1314 = vmatprep.subr.mxu0 %v1175
      %1315 = vmatpush2.msra.mxu0 %v1174
      %1316 = vmatprep.subr.mxu0 %v1173
      %1317 = vmatpush2.msra.mxu0 %v1172
      %1318 = vmatprep.subr.mxu0 %v1171
      %1319 = vmatpush2.msra.mxu0 %v1170
      %1320 = vmatprep.subr.mxu0 %v1169
      %1321 = vmatpush2.msra.mxu0 %v1168
      %1322 = vmatprep.subr.mxu0 %v1167
      %1323 = vmatpush2.msra.mxu0 %v1166
      %1324 = vmatprep.subr.mxu0 %v1165
      %1325 = vmatpush2.msra.mxu0 %v1164
      %1326 = vmatprep.mubr.f32.mxu0 %v1114
      %1327 = vmatmul.mubr.f32.gmra.mxu0 %v1107
      %v1328 = vpop.f32.mrf.mxu0
      %v1329 = vadd.f32 %v1261, %v1328
      %v1330 = vpop.f32.mrf.mxu0
      %v1331 = vadd.f32 %v1261, %v1330
      %1332 = vdwg.mxu0
      %1333 = vmatprep.subr.mxu0 %v1227
      %1334 = vmatpush1.msra.mxu0 %v1226
      %1335 = vmatprep.subr.mxu0 %v1225
      %1336 = vmatpush1.msra.mxu0 %v1224
      %1337 = vmatprep.subr.mxu0 %v1223
      %1338 = vmatpush1.msra.mxu0 %v1222
      %1339 = vmatprep.subr.mxu0 %v1221
      %1340 = vmatpush1.msra.mxu0 %v1220
      %1341 = vmatprep.subr.mxu0 %v1219
      %1342 = vmatpush1.msra.mxu0 %v1218
      %1343 = vmatprep.subr.mxu0 %v1217
      %1344 = vmatpush1.msra.mxu0 %v1216
      %1345 = vmatprep.subr.mxu0 %v1215
      %1346 = vmatpush1.msra.mxu0 %v1214
      %1347 = vmatprep.subr.mxu0 %v1213
      %1348 = vmatpush1.msra.mxu0 %v1212
      %1349 = vmatprep.subr.mxu0 %v1211
      %1350 = vmatpush1.msra.mxu0 %v1210
      %1351 = vmatprep.subr.mxu0 %v1209
      %1352 = vmatpush1.msra.mxu0 %v1208
      %1353 = vmatprep.subr.mxu0 %v1207
      %1354 = vmatpush1.msra.mxu0 %v1206
      %1355 = vmatprep.subr.mxu0 %v1205
      %1356 = vmatpush1.msra.mxu0 %v1204
      %1357 = vmatprep.subr.mxu0 %v1203
      %1358 = vmatpush1.msra.mxu0 %v1202
      %1359 = vmatprep.subr.mxu0 %v1201
      %1360 = vmatpush1.msra.mxu0 %v1200
      %1361 = vmatprep.subr.mxu0 %v1199
      %1362 = vmatpush1.msra.mxu0 %v1198
      %1363 = vmatprep.subr.mxu0 %v1197
      %1364 = vmatpush1.msra.mxu0 %v1196
      %1365 = vmatprep.subr.mxu0 %v1259
      %1366 = vmatpush2.msra.mxu0 %v1258
      %1367 = vmatprep.subr.mxu0 %v1257
      %1368 = vmatpush2.msra.mxu0 %v1256
      %1369 = vmatprep.subr.mxu0 %v1255
      %1370 = vmatpush2.msra.mxu0 %v1254
      %1371 = vmatprep.subr.mxu0 %v1253
      %1372 = vmatpush2.msra.mxu0 %v1252
      %1373 = vmatprep.subr.mxu0 %v1251
      %1374 = vmatpush2.msra.mxu0 %v1250
      %1375 = vmatprep.subr.mxu0 %v1249
      %1376 = vmatpush2.msra.mxu0 %v1248
      %1377 = vmatprep.subr.mxu0 %v1247
      %1378 = vmatpush2.msra.mxu0 %v1246
      %1379 = vmatprep.subr.mxu0 %v1245
      %1380 = vmatpush2.msra.mxu0 %v1244
      %1381 = vmatprep.subr.mxu0 %v1243
      %1382 = vmatpush2.msra.mxu0 %v1242
      %1383 = vmatprep.subr.mxu0 %v1241
      %1384 = vmatpush2.msra.mxu0 %v1240
      %1385 = vmatprep.subr.mxu0 %v1239
      %1386 = vmatpush2.msra.mxu0 %v1238
      %1387 = vmatprep.subr.mxu0 %v1237
      %1388 = vmatpush2.msra.mxu0 %v1236
      %1389 = vmatprep.subr.mxu0 %v1235
      %1390 = vmatpush2.msra.mxu0 %v1234
      %1391 = vmatprep.subr.mxu0 %v1233
      %1392 = vmatpush2.msra.mxu0 %v1232
      %1393 = vmatprep.subr.mxu0 %v1231
      %1394 = vmatpush2.msra.mxu0 %v1230
      %1395 = vmatprep.subr.mxu0 %v1229
      %1396 = vmatpush2.msra.mxu0 %v1228
      %1397 = vmatprep.mubr.f32.mxu0 %v1131
      %1398 = vmatmul.mubr.f32.gmra.mxu0 %v1130
      %v1399 = vpop.f32.mrf.mxu0
      %v1400 = vadd.f32 %v1329, %v1399
      %v1401 = vpop.f32.mrf.mxu0
      %v1402 = vadd.f32 %v1331, %v1401
      %1403 = vdwg.mxu0
      %v1404 = vxor.u32 %v1400, 2147483648
      %v1405 = vxor.u32 %v1402, 2147483648
      %v1406 = vmul.f32 %v1404, 1.442695
      %v1407 = vpow.pop %v1406
      %v1408 = vmul.f32 %v1405, 1.442695
      %v1409 = vpow.pop %v1408
      %v1410 = vadd.f32 %v1407, 1.0
      %v1411 = vadd.f32 %v1409, 1.0
      %v1412 = vrcp.pop %v1410
      %v1413 = vmul.f32 1.0, %v1412
      %v1414 = vrcp.pop %v1411
      %v1415 = vmul.f32 1.0, %v1414
      %v1416 = vadd.f32 %v1413, 1.0
      %v1417 = vadd.f32 %v1415, 1.0
      %v1418 = vlaneseq
      %v1419 = vshrl.u32 %v1418, 7
      %v1420 = vsub.s32 0, %v1419
      %v1421 = vrot.slane %v1416, %v1420
      %v1422 = vlaneseq
      %v1423 = vshrl.u32 %v1422, 7
      %v1424 = vsub.s32 0, %v1423
      %v1425 = vrot.slane %v1417, %v1424
      %v1428 = vcombine.low %v1421, %v1425
      %v1430 = vmul.f32 %v443, %v1428
      %v1432 = vcombine.high %v1430, %v1430
      %v1434 = vsel %vm610, %v456, 0
      %v1436 = vsel %vm614, %v1430, 0
      %v1438 = vsel %vm614, %v1432, 0
      %1440 = vmatprep.subr.mxu0 0.0
      %1441 = vmatpush1.msra.mxu0 0.0
      %1442 = vmatprep.subr.mxu0 0.0
      %1443 = vmatpush1.msra.mxu0 0.0
      %1444 = vmatprep.subr.mxu0 0.0
      %1445 = vmatpush1.msra.mxu0 0.0
      %1446 = vmatprep.subr.mxu0 0.0
      %1447 = vmatpush1.msra.mxu0 0.0
      %1448 = vmatprep.subr.mxu0 0.0
      %1449 = vmatpush1.msra.mxu0 0.0
      %1450 = vmatprep.subr.mxu0 0.0
      %1451 = vmatpush1.msra.mxu0 0.0
      %1452 = vmatprep.subr.mxu0 0.0
      %1453 = vmatpush1.msra.mxu0 0.0
      %1454 = vmatprep.subr.mxu0 0.0
      %1455 = vmatpush1.msra.mxu0 0.0
      %1456 = vmatprep.subr.mxu0 0.0
      %1457 = vmatpush1.msra.mxu0 0.0
      %1458 = vmatprep.subr.mxu0 0.0
      %1459 = vmatpush1.msra.mxu0 0.0
      %1460 = vmatprep.subr.mxu0 0.0
      %1461 = vmatpush1.msra.mxu0 0.0
      %1462 = vmatprep.subr.mxu0 0.0
      %1463 = vmatpush1.msra.mxu0 0.0
      %1464 = vmatprep.subr.mxu0 0.0
      %1465 = vmatpush1.msra.mxu0 0.0
      %1466 = vmatprep.subr.mxu0 0.0
      %1467 = vmatpush1.msra.mxu0 0.0
      %1468 = vmatprep.subr.mxu0 0.0
      %1469 = vmatpush1.msra.mxu0 0.0
      %1470 = vmatprep.subr.mxu0 %v1438
      %1471 = vmatpush1.msra.mxu0 %v1436
      %1472 = vmatprep.subr.mxu0 0.0
      %1473 = vmatpush2.msra.mxu0 0.0
      %1474 = vmatprep.subr.mxu0 0.0
      %1475 = vmatpush2.msra.mxu0 0.0
      %1476 = vmatprep.subr.mxu0 0.0
      %1477 = vmatpush2.msra.mxu0 0.0
      %1478 = vmatprep.subr.mxu0 0.0
      %1479 = vmatpush2.msra.mxu0 0.0
      %1480 = vmatprep.subr.mxu0 0.0
      %1481 = vmatpush2.msra.mxu0 0.0
      %1482 = vmatprep.subr.mxu0 0.0
      %1483 = vmatpush2.msra.mxu0 0.0
      %1484 = vmatprep.subr.mxu0 0.0
      %1485 = vmatpush2.msra.mxu0 0.0
      %1486 = vmatprep.subr.mxu0 0.0
      %1487 = vmatpush2.msra.mxu0 0.0
      %1488 = vmatprep.subr.mxu0 0.0
      %1489 = vmatpush2.msra.mxu0 0.0
      %1490 = vmatprep.subr.mxu0 0.0
      %1491 = vmatpush2.msra.mxu0 0.0
      %1492 = vmatprep.subr.mxu0 0.0
      %1493 = vmatpush2.msra.mxu0 0.0
      %1494 = vmatprep.subr.mxu0 0.0
      %1495 = vmatpush2.msra.mxu0 0.0
      %1496 = vmatprep.subr.mxu0 0.0
      %1497 = vmatpush2.msra.mxu0 0.0
      %1498 = vmatprep.subr.mxu0 0.0
      %1499 = vmatpush2.msra.mxu0 0.0
      %1500 = vmatprep.subr.mxu0 0.0
      %1501 = vmatpush2.msra.mxu0 0.0
      %1502 = vmatprep.subr.mxu0 0.0
      %1503 = vmatpush2.msra.mxu0 0.0
      %1504 = vmatprep.mubr.f32.mxu0 0.0
      %1505 = vmatmul.mubr.f32.gmra.mxu0 %v1434
      %v1506 = vpop.f32.mrf.mxu0
      %v1507 = vadd.f32 0.0, %v1506
      %v1508 = vpop.f32.mrf.mxu0
      %v1509 = vadd.f32 0.0, %v1508
      %1510 = vdwg.mxu0
      %v1512 = vcombine.high %v1097, %v1097
      %v1514 = vsel %vm610, %v455, 0
      %v1516 = vsel %vm614, %v1097, 0
      %v1518 = vsel %vm614, %v1512, 0
      %1520 = vmatprep.subr.mxu0 0.0
      %1521 = vmatpush1.msra.mxu0 0.0
      %1522 = vmatprep.subr.mxu0 0.0
      %1523 = vmatpush1.msra.mxu0 0.0
      %1524 = vmatprep.subr.mxu0 0.0
      %1525 = vmatpush1.msra.mxu0 0.0
      %1526 = vmatprep.subr.mxu0 0.0
      %1527 = vmatpush1.msra.mxu0 0.0
      %1528 = vmatprep.subr.mxu0 0.0
      %1529 = vmatpush1.msra.mxu0 0.0
      %1530 = vmatprep.subr.mxu0 0.0
      %1531 = vmatpush1.msra.mxu0 0.0
      %1532 = vmatprep.subr.mxu0 0.0
      %1533 = vmatpush1.msra.mxu0 0.0
      %1534 = vmatprep.subr.mxu0 0.0
      %1535 = vmatpush1.msra.mxu0 0.0
      %1536 = vmatprep.subr.mxu0 0.0
      %1537 = vmatpush1.msra.mxu0 0.0
      %1538 = vmatprep.subr.mxu0 0.0
      %1539 = vmatpush1.msra.mxu0 0.0
      %1540 = vmatprep.subr.mxu0 0.0
      %1541 = vmatpush1.msra.mxu0 0.0
      %1542 = vmatprep.subr.mxu0 0.0
      %1543 = vmatpush1.msra.mxu0 0.0
      %1544 = vmatprep.subr.mxu0 0.0
      %1545 = vmatpush1.msra.mxu0 0.0
      %1546 = vmatprep.subr.mxu0 0.0
      %1547 = vmatpush1.msra.mxu0 0.0
      %1548 = vmatprep.subr.mxu0 0.0
      %1549 = vmatpush1.msra.mxu0 0.0
      %1550 = vmatprep.subr.mxu0 %v1518
      %1551 = vmatpush1.msra.mxu0 %v1516
      %1552 = vmatprep.subr.mxu0 0.0
      %1553 = vmatpush2.msra.mxu0 0.0
      %1554 = vmatprep.subr.mxu0 0.0
      %1555 = vmatpush2.msra.mxu0 0.0
      %1556 = vmatprep.subr.mxu0 0.0
      %1557 = vmatpush2.msra.mxu0 0.0
      %1558 = vmatprep.subr.mxu0 0.0
      %1559 = vmatpush2.msra.mxu0 0.0
      %1560 = vmatprep.subr.mxu0 0.0
      %1561 = vmatpush2.msra.mxu0 0.0
      %1562 = vmatprep.subr.mxu0 0.0
      %1563 = vmatpush2.msra.mxu0 0.0
      %1564 = vmatprep.subr.mxu0 0.0
      %1565 = vmatpush2.msra.mxu0 0.0
      %1566 = vmatprep.subr.mxu0 0.0
      %1567 = vmatpush2.msra.mxu0 0.0
      %1568 = vmatprep.subr.mxu0 0.0
      %1569 = vmatpush2.msra.mxu0 0.0
      %1570 = vmatprep.subr.mxu0 0.0
      %1571 = vmatpush2.msra.mxu0 0.0
      %1572 = vmatprep.subr.mxu0 0.0
      %1573 = vmatpush2.msra.mxu0 0.0
      %1574 = vmatprep.subr.mxu0 0.0
      %1575 = vmatpush2.msra.mxu0 0.0
      %1576 = vmatprep.subr.mxu0 0.0
      %1577 = vmatpush2.msra.mxu0 0.0
      %1578 = vmatprep.subr.mxu0 0.0
      %1579 = vmatpush2.msra.mxu0 0.0
      %1580 = vmatprep.subr.mxu0 0.0
      %1581 = vmatpush2.msra.mxu0 0.0
      %1582 = vmatprep.subr.mxu0 0.0
      %1583 = vmatpush2.msra.mxu0 0.0
      %1584 = vmatprep.mubr.f32.mxu0 0.0
      %1585 = vmatmul.mubr.f32.gmra.mxu0 %v1514
      %v1586 = vpop.f32.mrf.mxu0
      %v1587 = vadd.f32 %v1507, %v1586
      %v1588 = vpop.f32.mrf.mxu0
      %v1589 = vadd.f32 %v1509, %v1588
      %1590 = vdwg.mxu0
      %1591 = vst [vmem:[%s441] sm:$0xff] %v1587
      %1592 = vst [vmem:[%s441 + $0x8] sm:$0xff] %v1589
      %p1593 = scmp.lt.s32.totalorder %s25, 1
      %s1594 = scalar_select %p1593, %s25, 1
      %s1595 = smul.addr %s1594, 2
      %s1596 = smul.addr %s1595, 8
      %s1597 = scalar_lea.vmem %s13, %s1596
      // Predicated region
      $region73: #{mix_saca.1} parent=71 // pred_check
        %p1598 = pneg %p321
      $region74: #{mix_saca.1} parent=71 // pred_check_branch
        %1600 = sbr.rel (%p1598) target = $region76
      $region75: #{mix_saca.1} parent=71 // pred_region
        _
      $region76: #{mix_saca.1} parent=71 // pred_fallthru
        _
    $region72: #{mix_saca.1} parent=5 // pred_fallthru
      _
    %p1601 = scmp.le.s32.totalorder 2, %s20
    // Predicated region
    $region77: #{mix_saca.1} parent=5 // pred_check
      %p1602 = pneg %p1601
    $region78: #{mix_saca.1} parent=5 // pred_check_branch
      %1604 = sbr.rel (%p1602) target = $region80
    $region79: #{mix_saca.1} parent=5 // pred_region
      %s1605 = ssub.s32 %s20, 2
      // Predicated region
      $region81: #{mix_saca.1} parent=79 // pred_check
        %p1606 = pneg %p327
      $region82: #{mix_saca.1} parent=79 // pred_check_branch
        %1608 = sbr.rel (%p1606) target = $region84
      $region83: #{mix_saca.1} parent=79 // pred_region
        %p1609 = scmp.lt.s32.totalorder %s26, 1
        %s1610 = scalar_select %p1609, %s26, 1
        %s1611 = smul.addr %s1610, 2
        %s1612 = smul.addr %s1611, 8
        %s1613 = scalar_lea.vmem %s13, %s1612
      $region84: #{mix_saca.1} parent=79 // pred_fallthru
        _
    $region80: #{mix_saca.1} parent=5 // pred_fallthru
      _
  $region6: #{mix_saca.1} parent=0 // loop_footer
    %s24 = sadd.s32 1, %s20
  $region7: #{mix_saca.1} parent=0 // loop_footer_branch
    %19 = sbr.rel target = $region3
  $region8: #{mix_saca.1} parent=0 // loop_exit
    _

</llo_original>
